<compile_context>
chip_gen: v6e
topology: v6e:2x2x1
jax: 0.10.0
libtpu: 0.0.40
codegen_flags: <defaults>
</compile_context>

<pallas_src>
import functools

import jax
import jax.numpy as jnp
from jax import lax
from jax.experimental import pallas as pl
from jax.experimental.pallas import tpu as pltpu


def _round_up(x, m):
    return (x + m - 1) // m * m


# ---------------------------------------------------------------------------
# Kernel 1: sliding-window conv.  One full-contraction MXU matmul per output
# depth plane, fused "previous layer BN affine + ReLU + mask" on the loaded
# plane, fused BatchNorm statistics (masked sum / sum-of-squares) on the
# produced plane.
# ---------------------------------------------------------------------------
def _make_conv_kernel(K, p, Cin, Din, Wp, lane_shift, Qout, fuse_affine, fuse_relu):
    Kh = K * K * Cin          # slab rows per kd group
    base = (K - 1) * Kh       # row offset of the newest (kd = K-1) group

    def kernel(x_ref, scale_ref, shift_ref, mask_ref, w_ref,
               o_ref, sum_ref, sq_ref, lhs_ref, pad_ref):
        s = pl.program_id(1)                      # s in [0, Do+p); output plane d = s - p

        @pl.when(s == 0)
        def _init():
            # Zero the slab (covers the negative-depth pad planes), the padded
            # plane's ring/tail (never touched again), and the BN accumulators.
            lhs_ref[...] = jnp.zeros_like(lhs_ref)
            pad_ref[...] = jnp.zeros_like(pad_ref)
            sum_ref[...] = jnp.zeros_like(sum_ref)
            sq_ref[...] = jnp.zeros_like(sq_ref)

        # ---- slide the depth window: kd groups 1..K-1 -> 0..K-2 (aligned moves).
        @pl.when(s > 0)
        def _slide():
            for kd in range(K - 1):
                lhs_ref[kd * Kh:(kd + 1) * Kh, :] = (
                    lhs_ref[(kd + 1) * Kh:(kd + 2) * Kh, :])

        # ---- process the ONE new input plane (input depth == s), fusing the
        #      previous layer's BN affine + ReLU and the hoisted validity mask.
        plane = x_ref[0, 0].astype(jnp.float32)             # (Cin, Qout)
        if fuse_affine:
            plane = plane * scale_ref[...] + shift_ref[...]
        if fuse_relu:
            plane = jnp.maximum(plane, 0.0)
        new_valid = (s < Din).astype(jnp.float32)            # below-bottom depth pad
        plane = plane * (mask_ref[...] * new_valid)

        # Embed into the zero-ringed padded layout, then carve the K^2 shifted
        # slices for the newest kd group only (everything stays in compute dtype).
        pad_ref[:, lane_shift:lane_shift + Qout] = plane.astype(pad_ref.dtype)
        for kh in range(K):
            for kw in range(K):
                off = kh * Wp + kw
                r = base + (kh * K + kw) * Cin
                lhs_ref[r:r + Cin, :] = pad_ref[:, off:off + Qout]

        # ---- after the p warm-up steps: one well-filled MXU matmul
        #      (Cout, K^3*Cin) @ (K^3*Cin, Qout), f32 accumulation.
        @pl.when(s >= p)
        def _compute():
            y = jnp.dot(w_ref[...], lhs_ref[...],
                        preferred_element_type=jnp.float32)
            o_ref[0, 0] = y.astype(o_ref.dtype)               # lane-dense store
            ym = y * mask_ref[...]                            # hoisted validity mask
            sum_ref[0] += jnp.sum(ym, axis=1, keepdims=True)
            sq_ref[0] += jnp.sum(ym * ym, axis=1, keepdims=True)

    return kernel


def _conv_layer_pass(x_dense, w_mat, scale_in, shift_in, mask, *, K, p, Do, Wp,
                     lane_shift, Qout, Qin, fuse_affine, fuse_relu, compute_dtype):
    N, Din, Cin, _ = x_dense.shape
    Cout, KKKC = w_mat.shape

    kernel = _make_conv_kernel(K, p, Cin, Din, Wp, lane_shift, Qout,
                               fuse_affine, fuse_relu)

    in_specs = [
        # exactly ONE new depth plane per step (each plane is DMA'd once per layer)
        pl.BlockSpec((1, 1, Cin, Qout),
                     lambda n, s: (n, jnp.minimum(s, Din - 1), 0, 0)),
        pl.BlockSpec((Cin, 1), lambda n, s: (0, 0)),      # prev-layer BN scale (resident)
        pl.BlockSpec((Cin, 1), lambda n, s: (0, 0)),      # prev-layer BN shift (resident)
        pl.BlockSpec((1, Qout), lambda n, s: (0, 0)),     # validity mask (resident)
        pl.BlockSpec((Cout, KKKC), lambda n, s: (0, 0)),  # weights (resident)
    ]
    out_shape = (
        jax.ShapeDtypeStruct((N, Do, Cout, Qout), compute_dtype),
        jax.ShapeDtypeStruct((N, Cout, 1), jnp.float32),
        jax.ShapeDtypeStruct((N, Cout, 1), jnp.float32),
    )
    out_specs = [
        pl.BlockSpec((1, 1, Cout, Qout),
                     lambda n, s: (n, jnp.maximum(s - p, 0), 0, 0)),
        pl.BlockSpec((1, Cout, 1), lambda n, s: (n, 0, 0)),
        pl.BlockSpec((1, Cout, 1), lambda n, s: (n, 0, 0)),
    ]

    # explicit VMEM budget (review: re-derive for v7x's 64 MiB physical VMEM)
    cd = jnp.dtype(compute_dtype).itemsize
    xd = jnp.dtype(x_dense.dtype).itemsize
    est = (KKKC * Qout * cd            # patch slab
           + Cin * Qin * cd            # zero-ringed padded plane
           + 2 * Cin * Qout * xd       # double-buffered input plane
           + 2 * Cout * KKKC * cd      # weights
           + 2 * Cout * Qout * cd      # output plane
           + 4 * (Cout + Qout) * 4)    # scale / shift / mask / stats
    vmem_limit = int(max(4 * est, 32 * 1024 * 1024))

    return pl.pallas_call(
        kernel,
        out_shape=out_shape,
        grid_spec=pltpu.PrefetchScalarGridSpec(
            num_scalar_prefetch=0,
            grid=(N, Do + p),           # p warm-up steps prime the sliding window
            in_specs=in_specs,
            out_specs=out_specs,
            scratch_shapes=[
                pltpu.VMEM((KKKC, Qout), compute_dtype),   # patch slab (compute dtype)
                pltpu.VMEM((Cin, Qin), compute_dtype),     # padded new-plane scratch
            ]),
        compiler_params=pltpu.CompilerParams(
            dimension_semantics=("parallel", "arbitrary"),
            vmem_limit_bytes=vmem_limit),
    )(x_dense, scale_in, shift_in, mask, w_mat)


# ---------------------------------------------------------------------------
# Kernel 2: final BN (no act) + residual add (f32, lane-dense) + ReLU
# ---------------------------------------------------------------------------
def _bn_residual_kernel(x_ref, res_ref, scale_ref, shift_ref, o_ref):
    y = x_ref[0, 0].astype(jnp.float32) * scale_ref[...] + shift_ref[...]
    o_ref[0, 0] = jnp.maximum(y + res_ref[0, 0], 0.0)


def _bn_residual_relu_pass(conv_out, res_dense, scale, shift):
    N, Do, Cout, Qout = conv_out.shape
    return pl.pallas_call(
        _bn_residual_kernel,
        out_shape=jax.ShapeDtypeStruct((N, Do, Cout, Qout), jnp.float32),
        grid_spec=pltpu.PrefetchScalarGridSpec(
            num_scalar_prefetch=0,
            grid=(N, Do),
            in_specs=[
                pl.BlockSpec((1, 1, Cout, Qout), lambda n, d: (n, d, 0, 0)),
                pl.BlockSpec((1, 1, Cout, Qout), lambda n, d: (n, d, 0, 0)),
                pl.BlockSpec((Cout, 1), lambda n, d: (0, 0)),
                pl.BlockSpec((Cout, 1), lambda n, d: (0, 0)),
            ],
            out_specs=pl.BlockSpec((1, 1, Cout, Qout), lambda n, d: (n, d, 0, 0)),
        ),
        compiler_params=pltpu.CompilerParams(
            dimension_semantics=("parallel", "parallel")),
    )(conv_out, res_dense, scale, shift)


# ---------------------------------------------------------------------------
# Wrapper glue
# ---------------------------------------------------------------------------
def _pack_dense(x, Wp, Qout):
    """(N, C, D, H, W) -> lane-dense channel-inner (N, D, C, Qout), zeroed pad
    columns / tail. Qout = round_up(H * Wp, 128)."""
    N, C, D, H, W = x.shape
    xt = jnp.transpose(x, (0, 2, 1, 3, 4))                   # (N, D, C, H, W)
    xt = jnp.pad(xt, ((0, 0),) * 4 + ((0, Wp - W),))
    xt = xt.reshape(N, D, C, H * Wp)
    return jnp.pad(xt, ((0, 0), (0, 0), (0, 0), (0, Qout - H * Wp)))


def _weight_to_mat(w, compute_dtype):
    """(Cout, Cin, K, K, K) -> (Cout, K^3*Cin), columns ordered (kd, kh, kw, ci)."""
    Cout, Cin, K = w.shape[0], w.shape[1], w.shape[2]
    wm = jnp.transpose(w, (2, 3, 4, 1, 0)).reshape(K * K * K * Cin, Cout)
    return jnp.transpose(wm, (1, 0)).astype(compute_dtype)


def _fold_bn(sum_p, sq_p, gamma, beta, count, eps):
    s = jnp.sum(sum_p, axis=0)                               # (Cout, 1)
    sq = jnp.sum(sq_p, axis=0)
    mean = s / count
    var = jnp.maximum(sq / count - mean * mean, 0.0)         # biased var, clamped
    scale = gamma.reshape(-1, 1) * lax.rsqrt(var + eps)
    shift = beta.reshape(-1, 1) - mean * scale
    return scale.astype(jnp.float32), shift.astype(jnp.float32)


@functools.partial(jax.jit,
                   static_argnames=("ksize", "padding", "eps", "compute_dtype"))
def residual_block3(x, weights, gammas, betas, *, ksize, padding, eps=1e-5,
                    compute_dtype=jnp.bfloat16):
    """Forward of ResidualBlock3 (BatchNorm in training mode; the conv bias is
    dropped because a per-channel constant before BN cancels exactly)."""
    N, C, D, H, W = x.shape
    K, p = ksize, padding
    assert 2 * p == K - 1, "residual add requires 'same' spatial size"
    Wp = W + 2 * p
    Do, Ho, Wo = D, H, W

    Qout = _round_up(Ho * Wp, 128)                           # lane-dense plane width
    Qin = _round_up(Qout + (K - 1) * (Wp + 1), 128)          # padded plane width (+tail)
    lane_shift = p * Wp + p
    count = N * Do * Ho * Wo
    num_convs = len(weights)

    # lane-dense f32 input: layer-0 conv input AND exact (non-quantized) residual
    x_dense = _pack_dense(x.astype(jnp.float32), Wp, Qout)
    q = jnp.arange(Qout, dtype=jnp.int32)
    mask = ((q < Ho * Wp) & ((q % Wp) < Wo)).astype(jnp.float32).reshape(1, Qout)

    cur = x_dense
    scale_in = jnp.ones((C, 1), jnp.float32)
    shift_in = jnp.zeros((C, 1), jnp.float32)
    fuse_prev_bn = False                                     # layer 0 sees the raw input
    for i in range(num_convs):
        w_mat = _weight_to_mat(weights[i], compute_dtype)
        conv_out, s_p, sq_p = _conv_layer_pass(
            cur, w_mat, scale_in, shift_in, mask,
            K=K, p=p, Do=Do, Wp=Wp, lane_shift=lane_shift, Qout=Qout, Qin=Qin,
            fuse_affine=fuse_prev_bn, fuse_relu=fuse_prev_bn,
            compute_dtype=compute_dtype)
        scale_in, shift_in = _fold_bn(s_p, sq_p, gammas[i], betas[i], count, eps)
        cur = conv_out
        fuse_prev_bn = True          # next conv applies this layer's BN + ReLU on load

    y = _bn_residual_relu_pass(cur, x_dense, scale_in, shift_in)

    # single cheap unpack of the final result back to NCDHW
    y = y[..., : Ho * Wp].reshape(N, Do, C, Ho, Wp)[..., :Wo]
    return jnp.transpose(y, (0, 2, 1, 3, 4))


# ---------------------------------------------------------------------------
# Pure-JAX reference (keeps the conv bias to show dropping it is exact)
# ---------------------------------------------------------------------------
def _conv_bn_relu3_ref(x, w, b, gamma, beta, *, padding, eps=1e-5, do_act=True):
    p = padding
    conv = lax.conv_general_dilated(
        x, w, window_strides=(1, 1, 1), padding=[(p, p)] * 3,
        dimension_numbers=("NCDHW", "OIDHW", "NCDHW"))
    conv = conv + b.reshape(1, -1, 1, 1, 1)
    mean = conv.mean(axis=(0, 2, 3, 4), keepdims=True)
    var = conv.var(axis=(0, 2, 3, 4), keepdims=True)         # biased (PyTorch training BN)
    out = gamma.reshape(1, -1, 1, 1, 1) * (conv - mean) * lax.rsqrt(var + eps) \
        + beta.reshape(1, -1, 1, 1, 1)
    if do_act:
        out = jnp.maximum(out, 0.0)
    return out


def residual_block3_ref(x, weights, biases, gammas, betas, *, ksize, padding,
                        eps=1e-5):
    out = x
    n = len(weights)
    for i in range(n):
        out = _conv_bn_relu3_ref(out, weights[i], biases[i], gammas[i], betas[i],
                                 padding=padding, eps=eps, do_act=(i != n - 1))
    return jnp.maximum(x + out, 0.0)


if __name__ == "__main__":
    N, C = 2, 8
    D = H = W = 8
    ksize, padding, num_convs = 3, 1, 2

    key = jax.random.PRNGKey(0)
    key, kx = jax.random.split(key)
    x = jax.random.normal(kx, (N, C, D, H, W), dtype=jnp.float32)

    weights, biases, gammas, betas = [], [], [], []
    for _ in range(num_convs):
        key, kw_, kb_, kg_, kbe_ = jax.random.split(key, 5)
        weights.append(jax.random.normal(
            kw_, (C, C, ksize, ksize, ksize), jnp.float32) * 0.1)
        biases.append(jax.random.normal(kb_, (C,), jnp.float32) * 0.1)
        gammas.append(1.0 + 0.1 * jax.random.normal(kg_, (C,), jnp.float32))
        betas.append(0.1 * jax.random.normal(kbe_, (C,), jnp.float32))
    weights, biases, gammas, betas = map(tuple, (weights, biases, gammas, betas))

    ref = residual_block3_ref(x, weights, biases, gammas, betas,
                              ksize=ksize, padding=padding)

    # exact path: f32 MXU operands
    out_f32 = jax.block_until_ready(
        residual_block3(x, weights, gammas, betas, ksize=ksize, padding=padding,
                        compute_dtype=jnp.float32))
    assert out_f32.shape == (N, C, D, H, W), out_f32.shape
    err32 = float(jnp.max(jnp.abs(out_f32 - ref)))
    assert jnp.allclose(out_f32, ref, atol=1e-4, rtol=1e-4), err32

    # fast path: bf16 MXU operands + bf16 slab / intermediate, f32 accumulation
    out_bf16 = jax.block_until_ready(
        residual_block3(x, weights, gammas, betas, ksize=ksize, padding=padding,
                        compute_dtype=jnp.bfloat16))
    errbf = float(jnp.max(jnp.abs(out_bf16 - ref)))
    assert jnp.allclose(out_bf16, ref, atol=7e-2, rtol=7e-2), errbf

    print("KERNEL_OK")
</pallas_src>

<mosaic_0001>
module attributes {stable_mosaic.version = 11 : i64} {
  func.func @kernel(%arg0: i32, %arg1: i32, %arg2: memref<1x1x8x128xf32, #tpu.memory_space<vmem>>, %arg3: memref<8x1xf32, #tpu.memory_space<vmem>>, %arg4: memref<8x1xf32, #tpu.memory_space<vmem>>, %arg5: memref<1x128xf32, #tpu.memory_space<vmem>>, %arg6: memref<8x216xf32, #tpu.memory_space<vmem>>, %arg7: memref<1x1x8x128xf32, #tpu.memory_space<vmem>>, %arg8: memref<1x8x1xf32, #tpu.memory_space<vmem>>, %arg9: memref<1x8x1xf32, #tpu.memory_space<vmem>>, %arg10: memref<216x128xf32, #tpu.memory_space<vmem>>, %arg11: memref<8x256xf32, #tpu.memory_space<vmem>>) attributes {dimension_semantics = [#tpu.dimension_semantics<parallel>, #tpu.dimension_semantics<arbitrary>], iteration_bounds = array<i64: 2, 9>, scalar_prefetch = 0 : i64, scratch_operands = 2 : i64, tpu.core_type = #tpu.core_type<tc>, window_params = [{transform_indices = @transform_0, window_bounds = array<i64: 1, 1, 8, 128>}, {pipeline_mode = #tpu.pipeline_mode<synchronous>, transform_indices = @transform_1, window_bounds = array<i64: 8, 1>}, {pipeline_mode = #tpu.pipeline_mode<synchronous>, transform_indices = @transform_2, window_bounds = array<i64: 8, 1>}, {pipeline_mode = #tpu.pipeline_mode<synchronous>, transform_indices = @transform_3, window_bounds = array<i64: 1, 128>}, {pipeline_mode = #tpu.pipeline_mode<synchronous>, transform_indices = @transform_4, window_bounds = array<i64: 8, 216>}, {transform_indices = @transform_5, window_bounds = array<i64: 1, 1, 8, 128>}, {transform_indices = @transform_6, window_bounds = array<i64: 1, 8, 1>}, {transform_indices = @transform_7, window_bounds = array<i64: 1, 8, 1>}]} {
    %c0_i32 = arith.constant 0 : i32
    %0 = arith.cmpi eq, %arg1, %c0_i32 : i32
    %1 = arith.extui %0 : i1 to i32
    %c0_i32_0 = arith.constant 0 : i32
    %2 = arith.cmpi ne, %1, %c0_i32_0 : i32
    scf.if %2 {
      %cst = arith.constant 0.000000e+00 : f32
      %38 = vector.broadcast %cst : f32 to vector<216x128xf32>
      %c0_30 = arith.constant 0 : index
      %c0_31 = arith.constant 0 : index
      %39 = vector.load %arg10[%c0_30, %c0_31] : memref<216x128xf32, #tpu.memory_space<vmem>>, vector<216x128xf32>
      tpu.vector_store %arg10[%c0_30, %c0_31], %38 {strides = array<i32>} : memref<216x128xf32, #tpu.memory_space<vmem>>, vector<216x128xf32>,
      %cst_32 = arith.constant 0.000000e+00 : f32
      %40 = vector.broadcast %cst_32 : f32 to vector<8x256xf32>
      %c0_33 = arith.constant 0 : index
      %c0_34 = arith.constant 0 : index
      %41 = vector.load %arg11[%c0_33, %c0_34] : memref<8x256xf32, #tpu.memory_space<vmem>>, vector<8x256xf32>
      tpu.vector_store %arg11[%c0_33, %c0_34], %40 {strides = array<i32>} : memref<8x256xf32, #tpu.memory_space<vmem>>, vector<8x256xf32>,
      %cst_35 = arith.constant 0.000000e+00 : f32
      %42 = vector.broadcast %cst_35 : f32 to vector<1x8x1xf32>
      %c0_36 = arith.constant 0 : index
      %c0_37 = arith.constant 0 : index
      %c0_38 = arith.constant 0 : index
      %43 = vector.load %arg8[%c0_36, %c0_37, %c0_38] : memref<1x8x1xf32, #tpu.memory_space<vmem>>, vector<1x8x1xf32>
      tpu.vector_store %arg8[%c0_36, %c0_37, %c0_38], %42 {strides = array<i32>} : memref<1x8x1xf32, #tpu.memory_space<vmem>>, vector<1x8x1xf32>,
      %cst_39 = arith.constant 0.000000e+00 : f32
      %44 = vector.broadcast %cst_39 : f32 to vector<1x8x1xf32>
      %c0_40 = arith.constant 0 : index
      %c0_41 = arith.constant 0 : index
      %c0_42 = arith.constant 0 : index
      %45 = vector.load %arg9[%c0_40, %c0_41, %c0_42] : memref<1x8x1xf32, #tpu.memory_space<vmem>>, vector<1x8x1xf32>
      tpu.vector_store %arg9[%c0_40, %c0_41, %c0_42], %44 {strides = array<i32>} : memref<1x8x1xf32, #tpu.memory_space<vmem>>, vector<1x8x1xf32>,
    } else {
    }
    %c0_i32_1 = arith.constant 0 : i32
    %3 = arith.cmpi sgt, %arg1, %c0_i32_1 : i32
    %4 = arith.extui %3 : i1 to i32
    %c0_i32_2 = arith.constant 0 : i32
    %5 = arith.cmpi ne, %4, %c0_i32_2 : i32
    scf.if %5 {
      %c72 = arith.constant 72 : index
      %c0_30 = arith.constant 0 : index
      %38 = vector.load %arg10[%c72, %c0_30] : memref<216x128xf32, #tpu.memory_space<vmem>>, vector<72x128xf32>
      %c0_31 = arith.constant 0 : index
      %c0_32 = arith.constant 0 : index
      %39 = vector.load %arg10[%c0_31, %c0_32] : memref<216x128xf32, #tpu.memory_space<vmem>>, vector<72x128xf32>
      tpu.vector_store %arg10[%c0_31, %c0_32], %38 {strides = array<i32>} : memref<216x128xf32, #tpu.memory_space<vmem>>, vector<72x128xf32>,
      %c144_33 = arith.constant 144 : index
      %c0_34 = arith.constant 0 : index
      %40 = vector.load %arg10[%c144_33, %c0_34] : memref<216x128xf32, #tpu.memory_space<vmem>>, vector<72x128xf32>
      %c72_35 = arith.constant 72 : index
      %c0_36 = arith.constant 0 : index
      %41 = vector.load %arg10[%c72_35, %c0_36] : memref<216x128xf32, #tpu.memory_space<vmem>>, vector<72x128xf32>
      tpu.vector_store %arg10[%c72_35, %c0_36], %40 {strides = array<i32>} : memref<216x128xf32, #tpu.memory_space<vmem>>, vector<72x128xf32>,
    } else {
    }
    %c0 = arith.constant 0 : index
    %c0_3 = arith.constant 0 : index
    %c0_4 = arith.constant 0 : index
    %c0_5 = arith.constant 0 : index
    %6 = vector.load %arg2[%c0, %c0_3, %c0_4, %c0_5] : memref<1x1x8x128xf32, #tpu.memory_space<vmem>>, vector<1x1x8x128xf32>
    %7 = vector.shape_cast %6 : vector<1x1x8x128xf32> to vector<8x128xf32>
    %c8_i32 = arith.constant 8 : i32
    %8 = arith.cmpi slt, %arg1, %c8_i32 : i32
    %9 = arith.extui %8 : i1 to i32
    %10 = arith.sitofp %9 : i32 to f32
    %c0_6 = arith.constant 0 : index
    %c0_7 = arith.constant 0 : index
    %11 = vector.load %arg5[%c0_6, %c0_7] : memref<1x128xf32, #tpu.memory_space<vmem>>, vector<1x128xf32>
    %12 = vector.broadcast %10 : f32 to vector<1x128xf32>
    %13 = arith.mulf %11, %12 : vector<1x128xf32>
    %14 = vector.broadcast %13 : vector<1x128xf32> to vector<8x128xf32>
    %15 = arith.mulf %7, %14 : vector<8x128xf32>
    %c0_8 = arith.constant 0 : index
    %c11 = arith.constant 11 : index
    %16 = vector.load %arg11[%c0_8, %c11] : memref<8x256xf32, #tpu.memory_space<vmem>>, vector<8x128xf32>
    tpu.vector_store %arg11[%c0_8, %c11], %15 {strides = array<i32>} : memref<8x256xf32, #tpu.memory_space<vmem>>, vector<8x128xf32>,
    %c0_9 = arith.constant 0 : index
    %c0_10 = arith.constant 0 : index
    %17 = vector.load %arg11[%c0_9, %c0_10] : memref<8x256xf32, #tpu.memory_space<vmem>>, vector<8x128xf32>
    %c144 = arith.constant 144 : index
    %c0_11 = arith.constant 0 : index
    %18 = vector.load %arg10[%c144, %c0_11] : memref<216x128xf32, #tpu.memory_space<vmem>>, vector<8x128xf32>
    tpu.vector_store %arg10[%c144, %c0_11], %17 {strides = array<i32>} : memref<216x128xf32, #tpu.memory_space<vmem>>, vector<8x128xf32>,
    %c0_12 = arith.constant 0 : index
    %c1 = arith.constant 1 : index
    %19 = vector.load %arg11[%c0_12, %c1] : memref<8x256xf32, #tpu.memory_space<vmem>>, vector<8x128xf32>
    %c152 = arith.constant 152 : index
    %c0_13 = arith.constant 0 : index
    %20 = vector.load %arg10[%c152, %c0_13] : memref<216x128xf32, #tpu.memory_space<vmem>>, vector<8x128xf32>
    tpu.vector_store %arg10[%c152, %c0_13], %19 {strides = array<i32>} : memref<216x128xf32, #tpu.memory_space<vmem>>, vector<8x128xf32>,
    %c0_14 = arith.constant 0 : index
    %c2 = arith.constant 2 : index
    %21 = vector.load %arg11[%c0_14, %c2] : memref<8x256xf32, #tpu.memory_space<vmem>>, vector<8x128xf32>
    %c160 = arith.constant 160 : index
    %c0_15 = arith.constant 0 : index
    %22 = vector.load %arg10[%c160, %c0_15] : memref<216x128xf32, #tpu.memory_space<vmem>>, vector<8x128xf32>
    tpu.vector_store %arg10[%c160, %c0_15], %21 {strides = array<i32>} : memref<216x128xf32, #tpu.memory_space<vmem>>, vector<8x128xf32>,
    %c0_16 = arith.constant 0 : index
    %c10 = arith.constant 10 : index
    %23 = vector.load %arg11[%c0_16, %c10] : memref<8x256xf32, #tpu.memory_space<vmem>>, vector<8x128xf32>
    %c168 = arith.constant 168 : index
    %c0_17 = arith.constant 0 : index
    %24 = vector.load %arg10[%c168, %c0_17] : memref<216x128xf32, #tpu.memory_space<vmem>>, vector<8x128xf32>
    tpu.vector_store %arg10[%c168, %c0_17], %23 {strides = array<i32>} : memref<216x128xf32, #tpu.memory_space<vmem>>, vector<8x128xf32>,
    %c0_18 = arith.constant 0 : index
    %c11_19 = arith.constant 11 : index
    %25 = vector.load %arg11[%c0_18, %c11_19] : memref<8x256xf32, #tpu.memory_space<vmem>>, vector<8x128xf32>
    %c176 = arith.constant 176 : index
    %c0_20 = arith.constant 0 : index
    %26 = vector.load %arg10[%c176, %c0_20] : memref<216x128xf32, #tpu.memory_space<vmem>>, vector<8x128xf32>
    tpu.vector_store %arg10[%c176, %c0_20], %25 {strides = array<i32>} : memref<216x128xf32, #tpu.memory_space<vmem>>, vector<8x128xf32>,
    %c0_21 = arith.constant 0 : index
    %c12 = arith.constant 12 : index
    %27 = vector.load %arg11[%c0_21, %c12] : memref<8x256xf32, #tpu.memory_space<vmem>>, vector<8x128xf32>
    %c184 = arith.constant 184 : index
    %c0_22 = arith.constant 0 : index
    %28 = vector.load %arg10[%c184, %c0_22] : memref<216x128xf32, #tpu.memory_space<vmem>>, vector<8x128xf32>
    tpu.vector_store %arg10[%c184, %c0_22], %27 {strides = array<i32>} : memref<216x128xf32, #tpu.memory_space<vmem>>, vector<8x128xf32>,
    %c0_23 = arith.constant 0 : index
    %c20 = arith.constant 20 : index
    %29 = vector.load %arg11[%c0_23, %c20] : memref<8x256xf32, #tpu.memory_space<vmem>>, vector<8x128xf32>
    %c192 = arith.constant 192 : index
    %c0_24 = arith.constant 0 : index
    %30 = vector.load %arg10[%c192, %c0_24] : memref<216x128xf32, #tpu.memory_space<vmem>>, vector<8x128xf32>
    tpu.vector_store %arg10[%c192, %c0_24], %29 {strides = array<i32>} : memref<216x128xf32, #tpu.memory_space<vmem>>, vector<8x128xf32>,
    %c0_25 = arith.constant 0 : index
    %c21 = arith.constant 21 : index
    %31 = vector.load %arg11[%c0_25, %c21] : memref<8x256xf32, #tpu.memory_space<vmem>>, vector<8x128xf32>
    %c200 = arith.constant 200 : index
    %c0_26 = arith.constant 0 : index
    %32 = vector.load %arg10[%c200, %c0_26] : memref<216x128xf32, #tpu.memory_space<vmem>>, vector<8x128xf32>
    tpu.vector_store %arg10[%c200, %c0_26], %31 {strides = array<i32>} : memref<216x128xf32, #tpu.memory_space<vmem>>, vector<8x128xf32>,
    %c0_27 = arith.constant 0 : index
    %c22 = arith.constant 22 : index
    %33 = vector.load %arg11[%c0_27, %c22] : memref<8x256xf32, #tpu.memory_space<vmem>>, vector<8x128xf32>
    %c208 = arith.constant 208 : index
    %c0_28 = arith.constant 0 : index
    %34 = vector.load %arg10[%c208, %c0_28] : memref<216x128xf32, #tpu.memory_space<vmem>>, vector<8x128xf32>
    tpu.vector_store %arg10[%c208, %c0_28], %33 {strides = array<i32>} : memref<216x128xf32, #tpu.memory_space<vmem>>, vector<8x128xf32>,
    %c1_i32 = arith.constant 1 : i32
    %35 = arith.cmpi sge, %arg1, %c1_i32 : i32
    %36 = arith.extui %35 : i1 to i32
    %c0_i32_29 = arith.constant 0 : i32
    %37 = arith.cmpi ne, %36, %c0_i32_29 : i32
    scf.if %37 {
      %c0_30 = arith.constant 0 : index
      %c0_31 = arith.constant 0 : index
      %38 = vector.load %arg6[%c0_30, %c0_31] : memref<8x216xf32, #tpu.memory_space<vmem>>, vector<8x216xf32>
      %c0_32 = arith.constant 0 : index
      %c0_33 = arith.constant 0 : index
      %39 = vector.load %arg10[%c0_32, %c0_33] : memref<216x128xf32, #tpu.memory_space<vmem>>, vector<216x128xf32>
      %cst = arith.constant dense<0.000000e+00> : vector<8x128xf32>
      %40 = tpu.matmul %38, %39, %cst {dimension_numbers = #tpu.dot_dimension_numbers<[1], [0], [0], [1], [0, 0, 1, 1], [], []>} : vector<8x216xf32>, vector<216x128xf32>, vector<8x128xf32> -> vector<8x128xf32>
      %c0_34 = arith.constant 0 : index
      %c0_35 = arith.constant 0 : index
      %c0_36 = arith.constant 0 : index
      %c0_37 = arith.constant 0 : index
      %41 = vector.load %arg7[%c0_34, %c0_35, %c0_36, %c0_37] : memref<1x1x8x128xf32, #tpu.memory_space<vmem>>, vector<1x1x8x128xf32>
      %42 = vector.shape_cast %41 : vector<1x1x8x128xf32> to vector<8x128xf32>
      %43 = vector.shape_cast %40 : vector<8x128xf32> to vector<1x1x8x128xf32>
      tpu.vector_store %arg7[%c0_34, %c0_35, %c0_36, %c0_37], %43 {strides = array<i32>} : memref<1x1x8x128xf32, #tpu.memory_space<vmem>>, vector<1x1x8x128xf32>,
      %c0_38 = arith.constant 0 : index
      %c0_39 = arith.constant 0 : index
      %44 = vector.load %arg5[%c0_38, %c0_39] : memref<1x128xf32, #tpu.memory_space<vmem>>, vector<1x128xf32>
      %45 = vector.broadcast %44 : vector<1x128xf32> to vector<8x128xf32>
      %46 = arith.mulf %40, %45 : vector<8x128xf32>
      %c0_40 = arith.constant 0 : index
      %c0_41 = arith.constant 0 : index
      %c0_42 = arith.constant 0 : index
      %47 = vector.load %arg8[%c0_40, %c0_41, %c0_42] : memref<1x8x1xf32, #tpu.memory_space<vmem>>, vector<1x8x1xf32>
      %48 = vector.shape_cast %47 : vector<1x8x1xf32> to vector<8x1xf32>
      %cst_43 = arith.constant dense<0.000000e+00> : vector<8xf32>
      %49 = vector.multi_reduction <add>, %46, %cst_43 [1] : vector<8x128xf32> to vector<8xf32>
      %50 = vector.shape_cast %49 : vector<8xf32> to vector<8x1xf32>
      %51 = arith.addf %48, %50 : vector<8x1xf32>
      %c0_44 = arith.constant 0 : index
      %c0_45 = arith.constant 0 : index
      %c0_46 = arith.constant 0 : index
      %52 = vector.load %arg8[%c0_44, %c0_45, %c0_46] : memref<1x8x1xf32, #tpu.memory_space<vmem>>, vector<1x8x1xf32>
      %53 = vector.shape_cast %52 : vector<1x8x1xf32> to vector<8x1xf32>
      %54 = vector.shape_cast %51 : vector<8x1xf32> to vector<1x8x1xf32>
      tpu.vector_store %arg8[%c0_44, %c0_45, %c0_46], %54 {strides = array<i32>} : memref<1x8x1xf32, #tpu.memory_space<vmem>>, vector<1x8x1xf32>,
      %c0_47 = arith.constant 0 : index
      %c0_48 = arith.constant 0 : index
      %c0_49 = arith.constant 0 : index
      %55 = vector.load %arg9[%c0_47, %c0_48, %c0_49] : memref<1x8x1xf32, #tpu.memory_space<vmem>>, vector<1x8x1xf32>
      %56 = vector.shape_cast %55 : vector<1x8x1xf32> to vector<8x1xf32>
      %57 = arith.mulf %46, %46 : vector<8x128xf32>
      %cst_50 = arith.constant dense<0.000000e+00> : vector<8xf32>
      %58 = vector.multi_reduction <add>, %57, %cst_50 [1] : vector<8x128xf32> to vector<8xf32>
      %59 = vector.shape_cast %58 : vector<8xf32> to vector<8x1xf32>
      %60 = arith.addf %56, %59 : vector<8x1xf32>
      %c0_51 = arith.constant 0 : index
      %c0_52 = arith.constant 0 : index
      %c0_53 = arith.constant 0 : index
      %61 = vector.load %arg9[%c0_51, %c0_52, %c0_53] : memref<1x8x1xf32, #tpu.memory_space<vmem>>, vector<1x8x1xf32>
      %62 = vector.shape_cast %61 : vector<1x8x1xf32> to vector<8x1xf32>
      %63 = vector.shape_cast %60 : vector<8x1xf32> to vector<1x8x1xf32>
      tpu.vector_store %arg9[%c0_51, %c0_52, %c0_53], %63 {strides = array<i32>} : memref<1x8x1xf32, #tpu.memory_space<vmem>>, vector<1x8x1xf32>,
    } else {
    }
    return
  }
  func.func @transform_0(%arg0: i32, %arg1: i32) -> (i32, i32, i32, i32) {
    %c7_i32 = arith.constant 7 : i32
    %0 = arith.minsi %arg1, %c7_i32 : i32
    %c0_i32 = arith.constant 0 : i32
    %c0_i32_0 = arith.constant 0 : i32
    %c0_i32_1 = arith.constant 0 : i32
    return %arg0, %0, %c0_i32, %c0_i32_0 : i32, i32, i32, i32
  }
  func.func @transform_1(%arg0: i32, %arg1: i32) -> (i32, i32) {
    %c0_i32 = arith.constant 0 : i32
    %c0_i32_0 = arith.constant 0 : i32
    %c0_i32_1 = arith.constant 0 : i32
    return %c0_i32, %c0_i32_0 : i32, i32
  }
  func.func @transform_2(%arg0: i32, %arg1: i32) -> (i32, i32) {
    %c0_i32 = arith.constant 0 : i32
    %c0_i32_0 = arith.constant 0 : i32
    %c0_i32_1 = arith.constant 0 : i32
    return %c0_i32, %c0_i32_0 : i32, i32
  }
  func.func @transform_3(%arg0: i32, %arg1: i32) -> (i32, i32) {
    %c0_i32 = arith.constant 0 : i32
    %c0_i32_0 = arith.constant 0 : i32
    %c0_i32_1 = arith.constant 0 : i32
    return %c0_i32, %c0_i32_0 : i32, i32
  }
  func.func @transform_4(%arg0: i32, %arg1: i32) -> (i32, i32) {
    %c0_i32 = arith.constant 0 : i32
    %c0_i32_0 = arith.constant 0 : i32
    %c0_i32_1 = arith.constant 0 : i32
    return %c0_i32, %c0_i32_0 : i32, i32
  }
  func.func @transform_5(%arg0: i32, %arg1: i32) -> (i32, i32, i32, i32) {
    %c1_i32 = arith.constant 1 : i32
    %0 = arith.subi %arg1, %c1_i32 : i32
    %c0_i32 = arith.constant 0 : i32
    %1 = arith.maxsi %0, %c0_i32 : i32
    %c0_i32_0 = arith.constant 0 : i32
    %c0_i32_1 = arith.constant 0 : i32
    %c0_i32_2 = arith.constant 0 : i32
    return %arg0, %1, %c0_i32_0, %c0_i32_1 : i32, i32, i32, i32
  }
  func.func @transform_6(%arg0: i32, %arg1: i32) -> (i32, i32, i32) {
    %c0_i32 = arith.constant 0 : i32
    %c0_i32_0 = arith.constant 0 : i32
    %c0_i32_1 = arith.constant 0 : i32
    return %arg0, %c0_i32, %c0_i32_0 : i32, i32, i32
  }
  func.func @transform_7(%arg0: i32, %arg1: i32) -> (i32, i32, i32) {
    %c0_i32 = arith.constant 0 : i32
    %c0_i32_0 = arith.constant 0 : i32
    %c0_i32_1 = arith.constant 0 : i32
    return %arg0, %c0_i32, %c0_i32_0 : i32, i32, i32
  }
}

module attributes {stable_mosaic.version = 11 : i64} {
  func.func @_bn_residual_kernel(%arg0: i32, %arg1: i32, %arg2: memref<1x1x8x128xf32, #tpu.memory_space<vmem>>, %arg3: memref<1x1x8x128xf32, #tpu.memory_space<vmem>>, %arg4: memref<8x1xf32, #tpu.memory_space<vmem>>, %arg5: memref<8x1xf32, #tpu.memory_space<vmem>>, %arg6: memref<1x1x8x128xf32, #tpu.memory_space<vmem>>) attributes {dimension_semantics = [#tpu.dimension_semantics<parallel>, #tpu.dimension_semantics<parallel>], iteration_bounds = array<i64: 2, 8>, scalar_prefetch = 0 : i64, scratch_operands = 0 : i64, tpu.core_type = #tpu.core_type<tc>, window_params = [{transform_indices = @transform_0, window_bounds = array<i64: 1, 1, 8, 128>}, {transform_indices = @transform_1, window_bounds = array<i64: 1, 1, 8, 128>}, {pipeline_mode = #tpu.pipeline_mode<synchronous>, transform_indices = @transform_2, window_bounds = array<i64: 8, 1>}, {pipeline_mode = #tpu.pipeline_mode<synchronous>, transform_indices = @transform_3, window_bounds = array<i64: 8, 1>}, {transform_indices = @transform_4, window_bounds = array<i64: 1, 1, 8, 128>}]} {
    %c0 = arith.constant 0 : index
    %c0_0 = arith.constant 0 : index
    %c0_1 = arith.constant 0 : index
    %c0_2 = arith.constant 0 : index
    %0 = vector.load %arg2[%c0, %c0_0, %c0_1, %c0_2] : memref<1x1x8x128xf32, #tpu.memory_space<vmem>>, vector<1x1x8x128xf32>
    %1 = vector.shape_cast %0 : vector<1x1x8x128xf32> to vector<8x128xf32>
    %c0_3 = arith.constant 0 : index
    %c0_4 = arith.constant 0 : index
    %2 = vector.load %arg4[%c0_3, %c0_4] : memref<8x1xf32, #tpu.memory_space<vmem>>, vector<8x1xf32>
    %3 = vector.broadcast %2 : vector<8x1xf32> to vector<8x128xf32>
    %4 = arith.mulf %1, %3 : vector<8x128xf32>
    %c0_5 = arith.constant 0 : index
    %c0_6 = arith.constant 0 : index
    %5 = vector.load %arg5[%c0_5, %c0_6] : memref<8x1xf32, #tpu.memory_space<vmem>>, vector<8x1xf32>
    %6 = vector.broadcast %5 : vector<8x1xf32> to vector<8x128xf32>
    %7 = arith.addf %4, %6 : vector<8x128xf32>
    %c0_7 = arith.constant 0 : index
    %c0_8 = arith.constant 0 : index
    %c0_9 = arith.constant 0 : index
    %c0_10 = arith.constant 0 : index
    %8 = vector.load %arg3[%c0_7, %c0_8, %c0_9, %c0_10] : memref<1x1x8x128xf32, #tpu.memory_space<vmem>>, vector<1x1x8x128xf32>
    %9 = vector.shape_cast %8 : vector<1x1x8x128xf32> to vector<8x128xf32>
    %10 = arith.addf %7, %9 : vector<8x128xf32>
    %cst = arith.constant 0.000000e+00 : f32
    %11 = vector.broadcast %cst : f32 to vector<8x128xf32>
    %12 = arith.maximumf %10, %11 : vector<8x128xf32>
    %c0_11 = arith.constant 0 : index
    %c0_12 = arith.constant 0 : index
    %c0_13 = arith.constant 0 : index
    %c0_14 = arith.constant 0 : index
    %13 = vector.load %arg6[%c0_11, %c0_12, %c0_13, %c0_14] : memref<1x1x8x128xf32, #tpu.memory_space<vmem>>, vector<1x1x8x128xf32>
    %14 = vector.shape_cast %13 : vector<1x1x8x128xf32> to vector<8x128xf32>
    %15 = vector.shape_cast %12 : vector<8x128xf32> to vector<1x1x8x128xf32>
    tpu.vector_store %arg6[%c0_11, %c0_12, %c0_13, %c0_14], %15 {strides = array<i32>} : memref<1x1x8x128xf32, #tpu.memory_space<vmem>>, vector<1x1x8x128xf32>,
    return
  }
  func.func @transform_0(%arg0: i32, %arg1: i32) -> (i32, i32, i32, i32) {
    %c0_i32 = arith.constant 0 : i32
    %c0_i32_0 = arith.constant 0 : i32
    %c0_i32_1 = arith.constant 0 : i32
    return %arg0, %arg1, %c0_i32, %c0_i32_0 : i32, i32, i32, i32
  }
  func.func @transform_1(%arg0: i32, %arg1: i32) -> (i32, i32, i32, i32) {
    %c0_i32 = arith.constant 0 : i32
    %c0_i32_0 = arith.constant 0 : i32
    %c0_i32_1 = arith.constant 0 : i32
    return %arg0, %arg1, %c0_i32, %c0_i32_0 : i32, i32, i32, i32
  }
  func.func @transform_2(%arg0: i32, %arg1: i32) -> (i32, i32) {
    %c0_i32 = arith.constant 0 : i32
    %c0_i32_0 = arith.constant 0 : i32
    %c0_i32_1 = arith.constant 0 : i32
    return %c0_i32, %c0_i32_0 : i32, i32
  }
  func.func @transform_3(%arg0: i32, %arg1: i32) -> (i32, i32) {
    %c0_i32 = arith.constant 0 : i32
    %c0_i32_0 = arith.constant 0 : i32
    %c0_i32_1 = arith.constant 0 : i32
    return %c0_i32, %c0_i32_0 : i32, i32
  }
  func.func @transform_4(%arg0: i32, %arg1: i32) -> (i32, i32, i32, i32) {
    %c0_i32 = arith.constant 0 : i32
    %c0_i32_0 = arith.constant 0 : i32
    %c0_i32_1 = arith.constant 0 : i32
    return %arg0, %arg1, %c0_i32, %c0_i32_0 : i32, i32, i32, i32
  }
}

module attributes {stable_mosaic.version = 11 : i64} {
  func.func @kernel(%arg0: i32, %arg1: i32, %arg2: memref<1x1x8x128xf32, #tpu.memory_space<vmem>>, %arg3: memref<8x1xf32, #tpu.memory_space<vmem>>, %arg4: memref<8x1xf32, #tpu.memory_space<vmem>>, %arg5: memref<1x128xf32, #tpu.memory_space<vmem>>, %arg6: memref<8x216xf32, #tpu.memory_space<vmem>>, %arg7: memref<1x1x8x128xf32, #tpu.memory_space<vmem>>, %arg8: memref<1x8x1xf32, #tpu.memory_space<vmem>>, %arg9: memref<1x8x1xf32, #tpu.memory_space<vmem>>, %arg10: memref<216x128xf32, #tpu.memory_space<vmem>>, %arg11: memref<8x256xf32, #tpu.memory_space<vmem>>) attributes {dimension_semantics = [#tpu.dimension_semantics<parallel>, #tpu.dimension_semantics<arbitrary>], iteration_bounds = array<i64: 2, 9>, scalar_prefetch = 0 : i64, scratch_operands = 2 : i64, tpu.core_type = #tpu.core_type<tc>, window_params = [{transform_indices = @transform_0, window_bounds = array<i64: 1, 1, 8, 128>}, {pipeline_mode = #tpu.pipeline_mode<synchronous>, transform_indices = @transform_1, window_bounds = array<i64: 8, 1>}, {pipeline_mode = #tpu.pipeline_mode<synchronous>, transform_indices = @transform_2, window_bounds = array<i64: 8, 1>}, {pipeline_mode = #tpu.pipeline_mode<synchronous>, transform_indices = @transform_3, window_bounds = array<i64: 1, 128>}, {pipeline_mode = #tpu.pipeline_mode<synchronous>, transform_indices = @transform_4, window_bounds = array<i64: 8, 216>}, {transform_indices = @transform_5, window_bounds = array<i64: 1, 1, 8, 128>}, {transform_indices = @transform_6, window_bounds = array<i64: 1, 8, 1>}, {transform_indices = @transform_7, window_bounds = array<i64: 1, 8, 1>}]} {
    %c0_i32 = arith.constant 0 : i32
    %0 = arith.cmpi eq, %arg1, %c0_i32 : i32
    %1 = arith.extui %0 : i1 to i32
    %c0_i32_0 = arith.constant 0 : i32
    %2 = arith.cmpi ne, %1, %c0_i32_0 : i32
    scf.if %2 {
      %cst_34 = arith.constant 0.000000e+00 : f32
      %46 = vector.broadcast %cst_34 : f32 to vector<216x128xf32>
      %c0_35 = arith.constant 0 : index
      %c0_36 = arith.constant 0 : index
      %47 = vector.load %arg10[%c0_35, %c0_36] : memref<216x128xf32, #tpu.memory_space<vmem>>, vector<216x128xf32>
      tpu.vector_store %arg10[%c0_35, %c0_36], %46 {strides = array<i32>} : memref<216x128xf32, #tpu.memory_space<vmem>>, vector<216x128xf32>,
      %cst_37 = arith.constant 0.000000e+00 : f32
      %48 = vector.broadcast %cst_37 : f32 to vector<8x256xf32>
      %c0_38 = arith.constant 0 : index
      %c0_39 = arith.constant 0 : index
      %49 = vector.load %arg11[%c0_38, %c0_39] : memref<8x256xf32, #tpu.memory_space<vmem>>, vector<8x256xf32>
      tpu.vector_store %arg11[%c0_38, %c0_39], %48 {strides = array<i32>} : memref<8x256xf32, #tpu.memory_space<vmem>>, vector<8x256xf32>,
      %cst_40 = arith.constant 0.000000e+00 : f32
      %50 = vector.broadcast %cst_40 : f32 to vector<1x8x1xf32>
      %c0_41 = arith.constant 0 : index
      %c0_42 = arith.constant 0 : index
      %c0_43 = arith.constant 0 : index
      %51 = vector.load %arg8[%c0_41, %c0_42, %c0_43] : memref<1x8x1xf32, #tpu.memory_space<vmem>>, vector<1x8x1xf32>
      tpu.vector_store %arg8[%c0_41, %c0_42, %c0_43], %50 {strides = array<i32>} : memref<1x8x1xf32, #tpu.memory_space<vmem>>, vector<1x8x1xf32>,
      %cst_44 = arith.constant 0.000000e+00 : f32
      %52 = vector.broadcast %cst_44 : f32 to vector<1x8x1xf32>
      %c0_45 = arith.constant 0 : index
      %c0_46 = arith.constant 0 : index
      %c0_47 = arith.constant 0 : index
      %53 = vector.load %arg9[%c0_45, %c0_46, %c0_47] : memref<1x8x1xf32, #tpu.memory_space<vmem>>, vector<1x8x1xf32>
      tpu.vector_store %arg9[%c0_45, %c0_46, %c0_47], %52 {strides = array<i32>} : memref<1x8x1xf32, #tpu.memory_space<vmem>>, vector<1x8x1xf32>,
    } else {
    }
    %c0_i32_1 = arith.constant 0 : i32
    %3 = arith.cmpi sgt, %arg1, %c0_i32_1 : i32
    %4 = arith.extui %3 : i1 to i32
    %c0_i32_2 = arith.constant 0 : i32
    %5 = arith.cmpi ne, %4, %c0_i32_2 : i32
    scf.if %5 {
      %c72 = arith.constant 72 : index
      %c0_34 = arith.constant 0 : index
      %46 = vector.load %arg10[%c72, %c0_34] : memref<216x128xf32, #tpu.memory_space<vmem>>, vector<72x128xf32>
      %c0_35 = arith.constant 0 : index
      %c0_36 = arith.constant 0 : index
      %47 = vector.load %arg10[%c0_35, %c0_36] : memref<216x128xf32, #tpu.memory_space<vmem>>, vector<72x128xf32>
      tpu.vector_store %arg10[%c0_35, %c0_36], %46 {strides = array<i32>} : memref<216x128xf32, #tpu.memory_space<vmem>>, vector<72x128xf32>,
      %c144_37 = arith.constant 144 : index
      %c0_38 = arith.constant 0 : index
      %48 = vector.load %arg10[%c144_37, %c0_38] : memref<216x128xf32, #tpu.memory_space<vmem>>, vector<72x128xf32>
      %c72_39 = arith.constant 72 : index
      %c0_40 = arith.constant 0 : index
      %49 = vector.load %arg10[%c72_39, %c0_40] : memref<216x128xf32, #tpu.memory_space<vmem>>, vector<72x128xf32>
      tpu.vector_store %arg10[%c72_39, %c0_40], %48 {strides = array<i32>} : memref<216x128xf32, #tpu.memory_space<vmem>>, vector<72x128xf32>,
    } else {
    }
    %c0 = arith.constant 0 : index
    %c0_3 = arith.constant 0 : index
    %c0_4 = arith.constant 0 : index
    %c0_5 = arith.constant 0 : index
    %6 = vector.load %arg2[%c0, %c0_3, %c0_4, %c0_5] : memref<1x1x8x128xf32, #tpu.memory_space<vmem>>, vector<1x1x8x128xf32>
    %7 = vector.shape_cast %6 : vector<1x1x8x128xf32> to vector<8x128xf32>
    %c0_6 = arith.constant 0 : index
    %c0_7 = arith.constant 0 : index
    %8 = vector.load %arg3[%c0_6, %c0_7] : memref<8x1xf32, #tpu.memory_space<vmem>>, vector<8x1xf32>
    %9 = vector.broadcast %8 : vector<8x1xf32> to vector<8x128xf32>
    %10 = arith.mulf %7, %9 : vector<8x128xf32>
    %c0_8 = arith.constant 0 : index
    %c0_9 = arith.constant 0 : index
    %11 = vector.load %arg4[%c0_8, %c0_9] : memref<8x1xf32, #tpu.memory_space<vmem>>, vector<8x1xf32>
    %12 = vector.broadcast %11 : vector<8x1xf32> to vector<8x128xf32>
    %13 = arith.addf %10, %12 : vector<8x128xf32>
    %cst = arith.constant 0.000000e+00 : f32
    %14 = vector.broadcast %cst : f32 to vector<8x128xf32>
    %15 = arith.maximumf %13, %14 : vector<8x128xf32>
    %c8_i32 = arith.constant 8 : i32
    %16 = arith.cmpi slt, %arg1, %c8_i32 : i32
    %17 = arith.extui %16 : i1 to i32
    %18 = arith.sitofp %17 : i32 to f32
    %c0_10 = arith.constant 0 : index
    %c0_11 = arith.constant 0 : index
    %19 = vector.load %arg5[%c0_10, %c0_11] : memref<1x128xf32, #tpu.memory_space<vmem>>, vector<1x128xf32>
    %20 = vector.broadcast %18 : f32 to vector<1x128xf32>
    %21 = arith.mulf %19, %20 : vector<1x128xf32>
    %22 = vector.broadcast %21 : vector<1x128xf32> to vector<8x128xf32>
    %23 = arith.mulf %15, %22 : vector<8x128xf32>
    %c0_12 = arith.constant 0 : index
    %c11 = arith.constant 11 : index
    %24 = vector.load %arg11[%c0_12, %c11] : memref<8x256xf32, #tpu.memory_space<vmem>>, vector<8x128xf32>
    tpu.vector_store %arg11[%c0_12, %c11], %23 {strides = array<i32>} : memref<8x256xf32, #tpu.memory_space<vmem>>, vector<8x128xf32>,
    %c0_13 = arith.constant 0 : index
    %c0_14 = arith.constant 0 : index
    %25 = vector.load %arg11[%c0_13, %c0_14] : memref<8x256xf32, #tpu.memory_space<vmem>>, vector<8x128xf32>
    %c144 = arith.constant 144 : index
    %c0_15 = arith.constant 0 : index
    %26 = vector.load %arg10[%c144, %c0_15] : memref<216x128xf32, #tpu.memory_space<vmem>>, vector<8x128xf32>
    tpu.vector_store %arg10[%c144, %c0_15], %25 {strides = array<i32>} : memref<216x128xf32, #tpu.memory_space<vmem>>, vector<8x128xf32>,
    %c0_16 = arith.constant 0 : index
    %c1 = arith.constant 1 : index
    %27 = vector.load %arg11[%c0_16, %c1] : memref<8x256xf32, #tpu.memory_space<vmem>>, vector<8x128xf32>
    %c152 = arith.constant 152 : index
    %c0_17 = arith.constant 0 : index
    %28 = vector.load %arg10[%c152, %c0_17] : memref<216x128xf32, #tpu.memory_space<vmem>>, vector<8x128xf32>
    tpu.vector_store %arg10[%c152, %c0_17], %27 {strides = array<i32>} : memref<216x128xf32, #tpu.memory_space<vmem>>, vector<8x128xf32>,
    %c0_18 = arith.constant 0 : index
    %c2 = arith.constant 2 : index
    %29 = vector.load %arg11[%c0_18, %c2] : memref<8x256xf32, #tpu.memory_space<vmem>>, vector<8x128xf32>
    %c160 = arith.constant 160 : index
    %c0_19 = arith.constant 0 : index
    %30 = vector.load %arg10[%c160, %c0_19] : memref<216x128xf32, #tpu.memory_space<vmem>>, vector<8x128xf32>
    tpu.vector_store %arg10[%c160, %c0_19], %29 {strides = array<i32>} : memref<216x128xf32, #tpu.memory_space<vmem>>, vector<8x128xf32>,
    %c0_20 = arith.constant 0 : index
    %c10 = arith.constant 10 : index
    %31 = vector.load %arg11[%c0_20, %c10] : memref<8x256xf32, #tpu.memory_space<vmem>>, vector<8x128xf32>
    %c168 = arith.constant 168 : index
    %c0_21 = arith.constant 0 : index
    %32 = vector.load %arg10[%c168, %c0_21] : memref<216x128xf32, #tpu.memory_space<vmem>>, vector<8x128xf32>
    tpu.vector_store %arg10[%c168, %c0_21], %31 {strides = array<i32>} : memref<216x128xf32, #tpu.memory_space<vmem>>, vector<8x128xf32>,
    %c0_22 = arith.constant 0 : index
    %c11_23 = arith.constant 11 : index
    %33 = vector.load %arg11[%c0_22, %c11_23] : memref<8x256xf32, #tpu.memory_space<vmem>>, vector<8x128xf32>
    %c176 = arith.constant 176 : index
    %c0_24 = arith.constant 0 : index
    %34 = vector.load %arg10[%c176, %c0_24] : memref<216x128xf32, #tpu.memory_space<vmem>>, vector<8x128xf32>
    tpu.vector_store %arg10[%c176, %c0_24], %33 {strides = array<i32>} : memref<216x128xf32, #tpu.memory_space<vmem>>, vector<8x128xf32>,
    %c0_25 = arith.constant 0 : index
    %c12 = arith.constant 12 : index
    %35 = vector.load %arg11[%c0_25, %c12] : memref<8x256xf32, #tpu.memory_space<vmem>>, vector<8x128xf32>
    %c184 = arith.constant 184 : index
    %c0_26 = arith.constant 0 : index
    %36 = vector.load %arg10[%c184, %c0_26] : memref<216x128xf32, #tpu.memory_space<vmem>>, vector<8x128xf32>
    tpu.vector_store %arg10[%c184, %c0_26], %35 {strides = array<i32>} : memref<216x128xf32, #tpu.memory_space<vmem>>, vector<8x128xf32>,
    %c0_27 = arith.constant 0 : index
    %c20 = arith.constant 20 : index
    %37 = vector.load %arg11[%c0_27, %c20] : memref<8x256xf32, #tpu.memory_space<vmem>>, vector<8x128xf32>
    %c192 = arith.constant 192 : index
    %c0_28 = arith.constant 0 : index
    %38 = vector.load %arg10[%c192, %c0_28] : memref<216x128xf32, #tpu.memory_space<vmem>>, vector<8x128xf32>
    tpu.vector_store %arg10[%c192, %c0_28], %37 {strides = array<i32>} : memref<216x128xf32, #tpu.memory_space<vmem>>, vector<8x128xf32>,
    %c0_29 = arith.constant 0 : index
    %c21 = arith.constant 21 : index
    %39 = vector.load %arg11[%c0_29, %c21] : memref<8x256xf32, #tpu.memory_space<vmem>>, vector<8x128xf32>
    %c200 = arith.constant 200 : index
    %c0_30 = arith.constant 0 : index
    %40 = vector.load %arg10[%c200, %c0_30] : memref<216x128xf32, #tpu.memory_space<vmem>>, vector<8x128xf32>
    tpu.vector_store %arg10[%c200, %c0_30], %39 {strides = array<i32>} : memref<216x128xf32, #tpu.memory_space<vmem>>, vector<8x128xf32>,
    %c0_31 = arith.constant 0 : index
    %c22 = arith.constant 22 : index
    %41 = vector.load %arg11[%c0_31, %c22] : memref<8x256xf32, #tpu.memory_space<vmem>>, vector<8x128xf32>
    %c208 = arith.constant 208 : index
    %c0_32 = arith.constant 0 : index
    %42 = vector.load %arg10[%c208, %c0_32] : memref<216x128xf32, #tpu.memory_space<vmem>>, vector<8x128xf32>
    tpu.vector_store %arg10[%c208, %c0_32], %41 {strides = array<i32>} : memref<216x128xf32, #tpu.memory_space<vmem>>, vector<8x128xf32>,
    %c1_i32 = arith.constant 1 : i32
    %43 = arith.cmpi sge, %arg1, %c1_i32 : i32
    %44 = arith.extui %43 : i1 to i32
    %c0_i32_33 = arith.constant 0 : i32
    %45 = arith.cmpi ne, %44, %c0_i32_33 : i32
    scf.if %45 {
      %c0_34 = arith.constant 0 : index
      %c0_35 = arith.constant 0 : index
      %46 = vector.load %arg6[%c0_34, %c0_35] : memref<8x216xf32, #tpu.memory_space<vmem>>, vector<8x216xf32>
      %c0_36 = arith.constant 0 : index
      %c0_37 = arith.constant 0 : index
      %47 = vector.load %arg10[%c0_36, %c0_37] : memref<216x128xf32, #tpu.memory_space<vmem>>, vector<216x128xf32>
      %cst_38 = arith.constant dense<0.000000e+00> : vector<8x128xf32>
      %48 = tpu.matmul %46, %47, %cst_38 {dimension_numbers = #tpu.dot_dimension_numbers<[1], [0], [0], [1], [0, 0, 1, 1], [], []>} : vector<8x216xf32>, vector<216x128xf32>, vector<8x128xf32> -> vector<8x128xf32>
      %c0_39 = arith.constant 0 : index
      %c0_40 = arith.constant 0 : index
      %c0_41 = arith.constant 0 : index
      %c0_42 = arith.constant 0 : index
      %49 = vector.load %arg7[%c0_39, %c0_40, %c0_41, %c0_42] : memref<1x1x8x128xf32, #tpu.memory_space<vmem>>, vector<1x1x8x128xf32>
      %50 = vector.shape_cast %49 : vector<1x1x8x128xf32> to vector<8x128xf32>
      %51 = vector.shape_cast %48 : vector<8x128xf32> to vector<1x1x8x128xf32>
      tpu.vector_store %arg7[%c0_39, %c0_40, %c0_41, %c0_42], %51 {strides = array<i32>} : memref<1x1x8x128xf32, #tpu.memory_space<vmem>>, vector<1x1x8x128xf32>,
      %c0_43 = arith.constant 0 : index
      %c0_44 = arith.constant 0 : index
      %52 = vector.load %arg5[%c0_43, %c0_44] : memref<1x128xf32, #tpu.memory_space<vmem>>, vector<1x128xf32>
      %53 = vector.broadcast %52 : vector<1x128xf32> to vector<8x128xf32>
      %54 = arith.mulf %48, %53 : vector<8x128xf32>
      %c0_45 = arith.constant 0 : index
      %c0_46 = arith.constant 0 : index
      %c0_47 = arith.constant 0 : index
      %55 = vector.load %arg8[%c0_45, %c0_46, %c0_47] : memref<1x8x1xf32, #tpu.memory_space<vmem>>, vector<1x8x1xf32>
      %56 = vector.shape_cast %55 : vector<1x8x1xf32> to vector<8x1xf32>
      %cst_48 = arith.constant dense<0.000000e+00> : vector<8xf32>
      %57 = vector.multi_reduction <add>, %54, %cst_48 [1] : vector<8x128xf32> to vector<8xf32>
      %58 = vector.shape_cast %57 : vector<8xf32> to vector<8x1xf32>
      %59 = arith.addf %56, %58 : vector<8x1xf32>
      %c0_49 = arith.constant 0 : index
      %c0_50 = arith.constant 0 : index
      %c0_51 = arith.constant 0 : index
      %60 = vector.load %arg8[%c0_49, %c0_50, %c0_51] : memref<1x8x1xf32, #tpu.memory_space<vmem>>, vector<1x8x1xf32>
      %61 = vector.shape_cast %60 : vector<1x8x1xf32> to vector<8x1xf32>
      %62 = vector.shape_cast %59 : vector<8x1xf32> to vector<1x8x1xf32>
      tpu.vector_store %arg8[%c0_49, %c0_50, %c0_51], %62 {strides = array<i32>} : memref<1x8x1xf32, #tpu.memory_space<vmem>>, vector<1x8x1xf32>,
      %c0_52 = arith.constant 0 : index
      %c0_53 = arith.constant 0 : index
      %c0_54 = arith.constant 0 : index
      %63 = vector.load %arg9[%c0_52, %c0_53, %c0_54] : memref<1x8x1xf32, #tpu.memory_space<vmem>>, vector<1x8x1xf32>
      %64 = vector.shape_cast %63 : vector<1x8x1xf32> to vector<8x1xf32>
      %65 = arith.mulf %54, %54 : vector<8x128xf32>
      %cst_55 = arith.constant dense<0.000000e+00> : vector<8xf32>
      %66 = vector.multi_reduction <add>, %65, %cst_55 [1] : vector<8x128xf32> to vector<8xf32>
      %67 = vector.shape_cast %66 : vector<8xf32> to vector<8x1xf32>
      %68 = arith.addf %64, %67 : vector<8x1xf32>
      %c0_56 = arith.constant 0 : index
      %c0_57 = arith.constant 0 : index
      %c0_58 = arith.constant 0 : index
      %69 = vector.load %arg9[%c0_56, %c0_57, %c0_58] : memref<1x8x1xf32, #tpu.memory_space<vmem>>, vector<1x8x1xf32>
      %70 = vector.shape_cast %69 : vector<1x8x1xf32> to vector<8x1xf32>
      %71 = vector.shape_cast %68 : vector<8x1xf32> to vector<1x8x1xf32>
      tpu.vector_store %arg9[%c0_56, %c0_57, %c0_58], %71 {strides = array<i32>} : memref<1x8x1xf32, #tpu.memory_space<vmem>>, vector<1x8x1xf32>,
    } else {
    }
    return
  }
  func.func @transform_0(%arg0: i32, %arg1: i32) -> (i32, i32, i32, i32) {
    %c7_i32 = arith.constant 7 : i32
    %0 = arith.minsi %arg1, %c7_i32 : i32
    %c0_i32 = arith.constant 0 : i32
    %c0_i32_0 = arith.constant 0 : i32
    %c0_i32_1 = arith.constant 0 : i32
    return %arg0, %0, %c0_i32, %c0_i32_0 : i32, i32, i32, i32
  }
  func.func @transform_1(%arg0: i32, %arg1: i32) -> (i32, i32) {
    %c0_i32 = arith.constant 0 : i32
    %c0_i32_0 = arith.constant 0 : i32
    %c0_i32_1 = arith.constant 0 : i32
    return %c0_i32, %c0_i32_0 : i32, i32
  }
  func.func @transform_2(%arg0: i32, %arg1: i32) -> (i32, i32) {
    %c0_i32 = arith.constant 0 : i32
    %c0_i32_0 = arith.constant 0 : i32
    %c0_i32_1 = arith.constant 0 : i32
    return %c0_i32, %c0_i32_0 : i32, i32
  }
  func.func @transform_3(%arg0: i32, %arg1: i32) -> (i32, i32) {
    %c0_i32 = arith.constant 0 : i32
    %c0_i32_0 = arith.constant 0 : i32
    %c0_i32_1 = arith.constant 0 : i32
    return %c0_i32, %c0_i32_0 : i32, i32
  }
  func.func @transform_4(%arg0: i32, %arg1: i32) -> (i32, i32) {
    %c0_i32 = arith.constant 0 : i32
    %c0_i32_0 = arith.constant 0 : i32
    %c0_i32_1 = arith.constant 0 : i32
    return %c0_i32, %c0_i32_0 : i32, i32
  }
  func.func @transform_5(%arg0: i32, %arg1: i32) -> (i32, i32, i32, i32) {
    %c1_i32 = arith.constant 1 : i32
    %0 = arith.subi %arg1, %c1_i32 : i32
    %c0_i32 = arith.constant 0 : i32
    %1 = arith.maxsi %0, %c0_i32 : i32
    %c0_i32_0 = arith.constant 0 : i32
    %c0_i32_1 = arith.constant 0 : i32
    %c0_i32_2 = arith.constant 0 : i32
    return %arg0, %1, %c0_i32_0, %c0_i32_1 : i32, i32, i32, i32
  }
  func.func @transform_6(%arg0: i32, %arg1: i32) -> (i32, i32, i32) {
    %c0_i32 = arith.constant 0 : i32
    %c0_i32_0 = arith.constant 0 : i32
    %c0_i32_1 = arith.constant 0 : i32
    return %arg0, %c0_i32, %c0_i32_0 : i32, i32, i32
  }
  func.func @transform_7(%arg0: i32, %arg1: i32) -> (i32, i32, i32) {
    %c0_i32 = arith.constant 0 : i32
    %c0_i32_0 = arith.constant 0 : i32
    %c0_i32_1 = arith.constant 0 : i32
    return %arg0, %c0_i32, %c0_i32_0 : i32, i32, i32
  }
}

</mosaic_0001>

<llo_original>
// kernel: residual_block3.5
$region0: #{residual_block3.5}
  #allocation0 [shape = 'u32[]', space=smem, size = 0x4, offset = 0x4, fixed_abs, tag = 'smem constant byte address 0x4 - core index']
  #allocation1 [shape = 'u32[144,128]{1,0:T(1,128)}', space=vmem, size = 0x12000, scoped, tag = 'internal scratch']
  %s0 = inlined_call_operand.vmem [shape: f32[2,8,8,128], index: 0, kind: input, shape index: {}]
  %s1 = inlined_call_operand.vmem [shape: f32[2,8,8,128], index: 1, kind: input, shape index: {}]
  %s2 = inlined_call_operand.vmem [shape: f32[8,1], index: 2, kind: input, shape index: {}]
  %s3 = inlined_call_operand.vmem [shape: f32[8,1], index: 3, kind: input, shape index: {}]
  %s4 = inlined_call_operand.vmem [shape: f32[2,8,8,128], index: 4, kind: output, shape index: {}]
  %s5 = sld [smem:[#allocation0]]
  $region49: #{residual_block3.5} parent=0
    _
  %s7 = ssub.s32 1, %s5
  %s8 = scalar_select 0, %s7, %s5
  loop: start=0, step=1, limit=18
  $region2: #{residual_block3.5} parent=0 // loop_pre_header
    _
  $region3: #{residual_block3.5} parent=0 // loop_header
    %s10 = sphi 0, %s14
    %p11 = scmp.ge.s32.totalorder %s10, 18
    %s17 = sphi 0, %s29
    %s18 = sphi 0, %s25
    %s19 = sphi 0, %s17
    %s20 = sphi 0, %s18
    %s21 = sphi 0, %s19
    %s22 = sphi 0, %s20
    %s34 = sphi 0, %s36
    %s37 = sphi 0, %s34
    %s38 = sphi 0, %s37
    %s54 = sphi 0, %s38
    %s62 = sphi 0, %s64
    %s65 = sphi 0, %s62
    %s66 = sphi 0, %s65
    %s82 = sphi 0, %s66
    %s86 = sphi 0, %s86
    %s88 = sphi 0, %s86
    %s89 = sphi 0, %s88
    %s103 = sphi 0, %s89
    %s107 = sphi 0, %s107
    %s109 = sphi 0, %s107
    %s110 = sphi 0, %s109
    %s124 = sphi 0, %s110
    %s132 = sphi 0, %s134
    %s135 = sphi 0, %s132
    %s136 = sphi 0, %s135
    %s152 = sphi 0, %s136
  $region4: #{residual_block3.5} parent=0 // loop_header_branch
    %13 = sbr.rel (%p11) target = $region8
  $region5: #{residual_block3.5} parent=0 // loop_body
    %s15 = ssub.s32 %s10, 1
    %s16 = ssub.s32 %s10, 2
    %s23 = sadd.s32 1, %s18
    %p24 = scmp.ge.s32.totalorder %s23, 8
    %s25 = scalar_select %p24, 0, %s23
    %s26 = sadd.s32 1, %s17
    %s27 = scalar_select %p24, %s26, %s17
    %p28 = scmp.ge.s32.totalorder %s27, 2
    %s29 = scalar_select %p28, 0, %s27
    %s30 = ssub.s32 %s17, %s29
    %s31 = ssub.s32 %s18, %s25
    %s32 = sor.u32 %s30, %s31
    %p33 = scmp.eq.s32.totalorder %s32, 0
    %s35 = sadd.s32 %s34, 1
    %s36 = scalar_select %p33, %s34, %s35
    %p39 = pneg %p33
    %p40 = scmp.eq.s32.totalorder %s10, 15
    %p41 = por %p39, %p40
    %p42 = scmp.ne.s32.totalorder %s34, %s37
    %p43 = scmp.eq.s32.totalorder %s10, 0
    %p44 = por %p42, %p43
    %p45 = scmp.ne.s32.totalorder %s34, %s37
    %p46 = scmp.eq.s32.totalorder %s15, 15
    %p47 = por %p45, %p46
    %p48 = scmp.ne.s32.totalorder %s37, %s38
    %p49 = scmp.eq.s32.totalorder %s15, 0
    %p50 = por %p48, %p49
    %p51 = scmp.ne.s32.totalorder %s37, %s38
    %p52 = scmp.eq.s32.totalorder %s16, 15
    %p53 = por %p51, %p52
    %p55 = scmp.ne.s32.totalorder %s38, %s54
    %p56 = scmp.eq.s32.totalorder %s16, 0
    %p57 = por %p55, %p56
    %s58 = ssub.s32 %s17, %s29
    %s59 = ssub.s32 %s18, %s25
    %s60 = sor.u32 %s58, %s59
    %p61 = scmp.eq.s32.totalorder %s60, 0
    %s63 = sadd.s32 %s62, 1
    %s64 = scalar_select %p61, %s62, %s63
    %p67 = pneg %p61
    %p68 = scmp.eq.s32.totalorder %s10, 15
    %p69 = por %p67, %p68
    %p70 = scmp.ne.s32.totalorder %s62, %s65
    %p71 = scmp.eq.s32.totalorder %s10, 0
    %p72 = por %p70, %p71
    %p73 = scmp.ne.s32.totalorder %s62, %s65
    %p74 = scmp.eq.s32.totalorder %s15, 15
    %p75 = por %p73, %p74
    %p76 = scmp.ne.s32.totalorder %s65, %s66
    %p77 = scmp.eq.s32.totalorder %s15, 0
    %p78 = por %p76, %p77
    %p79 = scmp.ne.s32.totalorder %s65, %s66
    %p80 = scmp.eq.s32.totalorder %s16, 15
    %p81 = por %p79, %p80
    %p83 = scmp.ne.s32.totalorder %s66, %s82
    %p84 = scmp.eq.s32.totalorder %s16, 0
    %p85 = por %p83, %p84
    %s87 = sadd.s32 %s86, 1
    %p90 = scmp.eq.s32.totalorder %s10, 15
    %p91 = scmp.ne.s32.totalorder %s86, %s88
    %p92 = scmp.eq.s32.totalorder %s10, 0
    %p93 = por %p91, %p92
    %p94 = scmp.ne.s32.totalorder %s86, %s88
    %p95 = scmp.eq.s32.totalorder %s15, 15
    %p96 = por %p94, %p95
    %p97 = scmp.ne.s32.totalorder %s88, %s89
    %p98 = scmp.eq.s32.totalorder %s15, 0
    %p99 = por %p97, %p98
    %p100 = scmp.ne.s32.totalorder %s88, %s89
    %p101 = scmp.eq.s32.totalorder %s16, 15
    %p102 = por %p100, %p101
    %p104 = scmp.ne.s32.totalorder %s89, %s103
    %p105 = scmp.eq.s32.totalorder %s16, 0
    %p106 = por %p104, %p105
    %s108 = sadd.s32 %s107, 1
    %p111 = scmp.eq.s32.totalorder %s10, 15
    %p112 = scmp.ne.s32.totalorder %s107, %s109
    %p113 = scmp.eq.s32.totalorder %s10, 0
    %p114 = por %p112, %p113
    %p115 = scmp.ne.s32.totalorder %s107, %s109
    %p116 = scmp.eq.s32.totalorder %s15, 15
    %p117 = por %p115, %p116
    %p118 = scmp.ne.s32.totalorder %s109, %s110
    %p119 = scmp.eq.s32.totalorder %s15, 0
    %p120 = por %p118, %p119
    %p121 = scmp.ne.s32.totalorder %s109, %s110
    %p122 = scmp.eq.s32.totalorder %s16, 15
    %p123 = por %p121, %p122
    %p125 = scmp.ne.s32.totalorder %s110, %s124
    %p126 = scmp.eq.s32.totalorder %s16, 0
    %p127 = por %p125, %p126
    %s128 = ssub.s32 %s17, %s29
    %s129 = ssub.s32 %s18, %s25
    %s130 = sor.u32 %s128, %s129
    %p131 = scmp.eq.s32.totalorder %s130, 0
    %s133 = sadd.s32 %s132, 1
    %s134 = scalar_select %p131, %s132, %s133
    %p137 = pneg %p131
    %p138 = scmp.eq.s32.totalorder %s10, 15
    %p139 = por %p137, %p138
    %p140 = scmp.ne.s32.totalorder %s132, %s135
    %p141 = scmp.eq.s32.totalorder %s10, 0
    %p142 = por %p140, %p141
    %p143 = scmp.ne.s32.totalorder %s132, %s135
    %p144 = scmp.eq.s32.totalorder %s15, 15
    %p145 = por %p143, %p144
    %p146 = scmp.ne.s32.totalorder %s135, %s136
    %p147 = scmp.eq.s32.totalorder %s15, 0
    %p148 = por %p146, %p147
    %p149 = scmp.ne.s32.totalorder %s135, %s136
    %p150 = scmp.eq.s32.totalorder %s16, 15
    %p151 = por %p149, %p150
    %p153 = scmp.ne.s32.totalorder %s136, %s152
    %p154 = scmp.eq.s32.totalorder %s16, 0
    %p155 = por %p153, %p154
    %p156 = scmp.le.s32.totalorder 1, %s10
    %p157 = scmp.lt.s32.totalorder %s10, 17
    %p158 = pnand %p156, %p157
    %p159 = pneg %p158
    // Predicated region
    $region9: #{residual_block3.5} parent=5 // pred_check
      _
    $region10: #{residual_block3.5} parent=5 // pred_check_branch
      %161 = sbr.rel (%p158) target = $region12
    $region11: #{residual_block3.5} parent=5 // pred_region
      %s162 = ssub.s32 %s10, 1
      // Predicated region
      $region13: #{residual_block3.5} parent=11 // pred_check
        %p163 = pneg %p99
      $region14: #{residual_block3.5} parent=11 // pred_check_branch
        %165 = sbr.rel (%p163) target = $region16
      $region15: #{residual_block3.5} parent=11 // pred_region
        _
      $region16: #{residual_block3.5} parent=11 // pred_fallthru
        _
      // Predicated region
      $region17: #{residual_block3.5} parent=11 // pred_check
        %p166 = pneg %p120
      $region18: #{residual_block3.5} parent=11 // pred_check_branch
        %168 = sbr.rel (%p166) target = $region20
      $region19: #{residual_block3.5} parent=11 // pred_region
        _
      $region20: #{residual_block3.5} parent=11 // pred_fallthru
        _
    $region12: #{residual_block3.5} parent=5 // pred_fallthru
      _
    %p169 = scmp.lt.s32.totalorder %s10, 16
    // Predicated region
    $region21: #{residual_block3.5} parent=5 // pred_check
      %p170 = pneg %p169
    $region22: #{residual_block3.5} parent=5 // pred_check_branch
      %172 = sbr.rel (%p170) target = $region24
    $region23: #{residual_block3.5} parent=5 // pred_region
      // Predicated region
      $region25: #{residual_block3.5} parent=23 // pred_check
        %p173 = pneg %p44
      $region26: #{residual_block3.5} parent=23 // pred_check_branch
        %175 = sbr.rel (%p173) target = $region28
      $region27: #{residual_block3.5} parent=23 // pred_region
        %p176 = scmp.lt.s32.totalorder %s17, 1
        %s177 = scalar_select %p176, %s17, 1
        %p178 = scmp.lt.s32.totalorder %s18, 7
        %s179 = scalar_select %p178, %s18, 7
        %s180 = smul.addr %s177, 8
        %s181 = sadd.s32 %s179, %s180
        %s182 = smul.addr %s181, 8
        %s183 = scalar_lea.vmem %s0, %s182
      $region28: #{residual_block3.5} parent=23 // pred_fallthru
        _
      // Predicated region
      $region29: #{residual_block3.5} parent=23 // pred_check
        %p184 = pneg %p72
      $region30: #{residual_block3.5} parent=23 // pred_check_branch
        %186 = sbr.rel (%p184) target = $region32
      $region31: #{residual_block3.5} parent=23 // pred_region
        %p187 = scmp.lt.s32.totalorder %s17, 1
        %s188 = scalar_select %p187, %s17, 1
        %p189 = scmp.lt.s32.totalorder %s18, 7
        %s190 = scalar_select %p189, %s18, 7
        %s191 = smul.addr %s188, 8
        %s192 = sadd.s32 %s190, %s191
        %s193 = smul.addr %s192, 8
        %s194 = scalar_lea.vmem %s1, %s193
      $region32: #{residual_block3.5} parent=23 // pred_fallthru
        _
    $region24: #{residual_block3.5} parent=5 // pred_fallthru
      _
    %p195 = scmp.le.s32.totalorder 1, %s10
    %p196 = scmp.lt.s32.totalorder %s10, 17
    %p197 = pnand %p195, %p196
    %p198 = pneg %p197
    // Predicated region
    $region33: #{residual_block3.5} parent=5 // pred_check
      _
    $region34: #{residual_block3.5} parent=5 // pred_check_branch
      %200 = sbr.rel (%p197) target = $region36
    $region35: #{residual_block3.5} parent=5 // pred_region
      %s201 = ssub.s32 %s10, 1
      %p202 = scmp.lt.s32.totalorder %s19, 1
      %s203 = scalar_select %p202, %s19, 1
      %p204 = scmp.lt.s32.totalorder %s20, 7
      %s205 = scalar_select %p204, %s20, 7
      %s206 = smul.addr %s203, 8
      %s207 = sadd.s32 %s205, %s206
      %s208 = smul.addr %s207, 8
      %s209 = scalar_lea.vmem %s0, %s208
      %p210 = pneg %p50
      %p211 = pneg %p47
      %p212 = scmp.lt.s32.totalorder %s19, 1
      %s213 = scalar_select %p212, %s19, 1
      %p214 = scmp.lt.s32.totalorder %s20, 7
      %s215 = scalar_select %p214, %s20, 7
      %s216 = smul.addr %s213, 8
      %s217 = sadd.s32 %s215, %s216
      %s218 = smul.addr %s217, 8
      %s219 = scalar_lea.vmem %s1, %s218
      %p220 = pneg %p78
      %p221 = pneg %p75
      %p222 = pneg %p99
      %p223 = pneg %p96
      %p224 = pneg %p120
      %p225 = pneg %p117
      %p226 = pneg %p148
      %p227 = pneg %p145
      %p228 = scmp.lt.s32.totalorder %s19, 1
      %s229 = scalar_select %p228, %s19, 1
      %p230 = scmp.lt.s32.totalorder %s20, 7
      %s231 = scalar_select %p230, %s20, 7
      %s232 = smul.addr %s229, 8
      %s233 = sadd.s32 %s231, %s232
      %s234 = smul.addr %s233, 8
      %s235 = scalar_lea.vmem %s4, %s234
      %p236 = scmp.lt.s32.totalorder %s19, 1
      %s237 = scalar_select %p236, %s19, 1
      %p238 = scmp.lt.s32.totalorder %s20, 7
      %s239 = scalar_select %p238, %s20, 7
      %s240 = smul.addr %s237, 8
      %s241 = sadd.s32 %s239, %s240
      %s242 = smul.addr %s241, 8
      %s243 = scalar_lea.vmem %s0, %s242
      %p244 = scmp.lt.s32.totalorder %s19, 1
      %s245 = scalar_select %p244, %s19, 1
      %p246 = scmp.lt.s32.totalorder %s20, 7
      %s247 = scalar_select %p246, %s20, 7
      %s248 = smul.addr %s245, 8
      %s249 = sadd.s32 %s247, %s248
      %s250 = smul.addr %s249, 8
      %s251 = scalar_lea.vmem %s1, %s250
      %p252 = scmp.lt.s32.totalorder %s19, 1
      %s253 = scalar_select %p252, %s19, 1
      %p254 = scmp.lt.s32.totalorder %s20, 7
      %s255 = scalar_select %p254, %s20, 7
      %s256 = smul.addr %s253, 8
      %s257 = sadd.s32 %s255, %s256
      %s258 = smul.addr %s257, 8
      %s259 = scalar_lea.vmem %s4, %s258
      %v260 = vld [vmem:[%s243] sm:$0xff]
      %v261 = vld [vmem:[%s2] sm:$0xff]
      %263 = vset.pattern.permute.xlu0 0
      %264 = vperm.xlu0 %263, %v261
      %v265 = vpop.permute.xlu0 %264
      %v267 = vmul.f32 %v260, %v265
      %v268 = vld [vmem:[%s3] sm:$0xff]
      %270 = vset.pattern.permute.xlu0 0
      %271 = vperm.xlu0 %270, %v268
      %v272 = vpop.permute.xlu0 %271
      %v274 = vadd.f32 %v267, %v272
      %v275 = vld [vmem:[%s251] sm:$0xff]
      %v276 = vadd.f32 %v274, %v275
      %v277 = vmax.f32 %v276, 0.0
      %278 = vst [vmem:[%s259] sm:$0xff] %v277
      %p279 = scmp.lt.s32.totalorder %s19, 1
      %s280 = scalar_select %p279, %s19, 1
      %p281 = scmp.lt.s32.totalorder %s20, 7
      %s282 = scalar_select %p281, %s20, 7
      %s283 = smul.addr %s280, 8
      %s284 = sadd.s32 %s282, %s283
      %s285 = smul.addr %s284, 8
      %s286 = scalar_lea.vmem %s4, %s285
      // Predicated region
      $region37: #{residual_block3.5} parent=35 // pred_check
        %p287 = pneg %p145
      $region38: #{residual_block3.5} parent=35 // pred_check_branch
        %289 = sbr.rel (%p287) target = $region40
      $region39: #{residual_block3.5} parent=35 // pred_region
        _
      $region40: #{residual_block3.5} parent=35 // pred_fallthru
        _
    $region36: #{residual_block3.5} parent=5 // pred_fallthru
      _
    %p290 = scmp.le.s32.totalorder 2, %s10
    // Predicated region
    $region41: #{residual_block3.5} parent=5 // pred_check
      %p291 = pneg %p290
    $region42: #{residual_block3.5} parent=5 // pred_check_branch
      %293 = sbr.rel (%p291) target = $region44
    $region43: #{residual_block3.5} parent=5 // pred_region
      %s294 = ssub.s32 %s10, 2
      // Predicated region
      $region45: #{residual_block3.5} parent=43 // pred_check
        %p295 = pneg %p151
      $region46: #{residual_block3.5} parent=43 // pred_check_branch
        %297 = sbr.rel (%p295) target = $region48
      $region47: #{residual_block3.5} parent=43 // pred_region
        %p298 = scmp.lt.s32.totalorder %s21, 1
        %s299 = scalar_select %p298, %s21, 1
        %p300 = scmp.lt.s32.totalorder %s22, 7
        %s301 = scalar_select %p300, %s22, 7
        %s302 = smul.addr %s299, 8
        %s303 = sadd.s32 %s301, %s302
        %s304 = smul.addr %s303, 8
        %s305 = scalar_lea.vmem %s4, %s304
      $region48: #{residual_block3.5} parent=43 // pred_fallthru
        _
    $region44: #{residual_block3.5} parent=5 // pred_fallthru
      _
  $region6: #{residual_block3.5} parent=0 // loop_footer
    %s14 = sadd.s32 1, %s10
  $region7: #{residual_block3.5} parent=0 // loop_footer_branch
    %9 = sbr.rel target = $region3
  $region8: #{residual_block3.5} parent=0 // loop_exit
    _

// kernel: residual_block3.3
$region0: #{residual_block3.3}
  #allocation0 [shape = 'u32[]', space=smem, size = 0x4, offset = 0x4, fixed_abs, tag = 'smem constant byte address 0x4 - core index']
  #allocation1 [shape = 'u32[144,128]{1,0:T(1,128)}', space=vmem, size = 0x12000, scoped, tag = 'internal scratch']
  #allocation2 [shape = 'f32[216,128]{1,0:T(8,128)}', space=vmem, size = 0x1b000, scoped, tag = 'scratch operand']
  #allocation3 [shape = 'f32[8,256]{1,0:T(8,128)}', space=vmem, size = 0x2000, scoped, tag = 'scratch operand']
  %s0 = inlined_call_operand.vmem [shape: f32[2,8,8,128], index: 0, kind: input, shape index: {}]
  %s1 = inlined_call_operand.vmem [shape: f32[8,1], index: 1, kind: input, shape index: {}]
  %s2 = inlined_call_operand.vmem [shape: f32[8,1], index: 2, kind: input, shape index: {}]
  %s3 = inlined_call_operand.vmem [shape: f32[1,128], index: 3, kind: input, shape index: {}]
  %s4 = inlined_call_operand.vmem [shape: f32[8,216], index: 4, kind: input, shape index: {}]
  %s5 = inlined_call_operand.vmem [shape: f32[2,8,8,128], index: 5, kind: output, shape index: {0}]
  %s6 = inlined_call_operand.vmem [shape: f32[2,8,1], index: 6, kind: output, shape index: {1}]
  %s7 = inlined_call_operand.vmem [shape: f32[2,8,1], index: 7, kind: output, shape index: {2}]
  %8 = xla_tuple %s5, %s6, %s7
  %s9 = sld [smem:[#allocation0]]
  $region81: #{residual_block3.3} parent=0
    _
  %s11 = ssub.s32 1, %s9
  %s12 = scalar_select 0, %s11, %s9
  loop: start=0, step=1, limit=20
  $region2: #{residual_block3.3} parent=0 // loop_pre_header
    _
  $region3: #{residual_block3.3} parent=0 // loop_header
    %s14 = sphi 0, %s18
    %p15 = scmp.ge.s32.totalorder %s14, 20
    %s21 = sphi 0, %s33
    %s22 = sphi 0, %s29
    %s23 = sphi 0, %s21
    %s24 = sphi 0, %s22
    %s25 = sphi 0, %s23
    %s26 = sphi 0, %s24
    %s42 = sphi 0, %s44
    %s45 = sphi 0, %s42
    %s46 = sphi 0, %s45
    %s62 = sphi 0, %s46
    %s66 = sphi 0, %s66
    %s68 = sphi 0, %s66
    %s69 = sphi 0, %s68
    %s83 = sphi 0, %s69
    %s87 = sphi 0, %s87
    %s89 = sphi 0, %s87
    %s90 = sphi 0, %s89
    %s104 = sphi 0, %s90
    %s108 = sphi 0, %s108
    %s110 = sphi 0, %s108
    %s111 = sphi 0, %s110
    %s125 = sphi 0, %s111
    %s129 = sphi 0, %s129
    %s131 = sphi 0, %s129
    %s132 = sphi 0, %s131
    %s146 = sphi 0, %s132
    %s160 = sphi 0, %s162
    %s163 = sphi 0, %s160
    %s164 = sphi 0, %s163
    %s180 = sphi 0, %s164
    %s186 = sphi 0, %s188
    %s189 = sphi 0, %s186
    %s190 = sphi 0, %s189
    %s206 = sphi 0, %s190
    %s212 = sphi 0, %s214
    %s215 = sphi 0, %s212
    %s216 = sphi 0, %s215
    %s232 = sphi 0, %s216
  $region4: #{residual_block3.3} parent=0 // loop_header_branch
    %17 = sbr.rel (%p15) target = $region8
  $region5: #{residual_block3.3} parent=0 // loop_body
    %s19 = ssub.s32 %s14, 1
    %s20 = ssub.s32 %s14, 2
    %s27 = sadd.s32 1, %s22
    %p28 = scmp.ge.s32.totalorder %s27, 9
    %s29 = scalar_select %p28, 0, %s27
    %s30 = sadd.s32 1, %s21
    %s31 = scalar_select %p28, %s30, %s21
    %p32 = scmp.ge.s32.totalorder %s31, 2
    %s33 = scalar_select %p32, 0, %s31
    %p34 = scmp.lt.s32.totalorder %s22, 7
    %s35 = scalar_select %p34, %s22, 7
    %p36 = scmp.lt.s32.totalorder %s29, 7
    %s37 = scalar_select %p36, %s29, 7
    %s38 = ssub.s32 %s21, %s33
    %s39 = ssub.s32 %s35, %s37
    %s40 = sor.u32 %s38, %s39
    %p41 = scmp.eq.s32.totalorder %s40, 0
    %s43 = sadd.s32 %s42, 1
    %s44 = scalar_select %p41, %s42, %s43
    %p47 = pneg %p41
    %p48 = scmp.eq.s32.totalorder %s14, 17
    %p49 = por %p47, %p48
    %p50 = scmp.ne.s32.totalorder %s42, %s45
    %p51 = scmp.eq.s32.totalorder %s14, 0
    %p52 = por %p50, %p51
    %p53 = scmp.ne.s32.totalorder %s42, %s45
    %p54 = scmp.eq.s32.totalorder %s19, 17
    %p55 = por %p53, %p54
    %p56 = scmp.ne.s32.totalorder %s45, %s46
    %p57 = scmp.eq.s32.totalorder %s19, 0
    %p58 = por %p56, %p57
    %p59 = scmp.ne.s32.totalorder %s45, %s46
    %p60 = scmp.eq.s32.totalorder %s20, 17
    %p61 = por %p59, %p60
    %p63 = scmp.ne.s32.totalorder %s46, %s62
    %p64 = scmp.eq.s32.totalorder %s20, 0
    %p65 = por %p63, %p64
    %s67 = sadd.s32 %s66, 1
    %p70 = scmp.eq.s32.totalorder %s14, 17
    %p71 = scmp.ne.s32.totalorder %s66, %s68
    %p72 = scmp.eq.s32.totalorder %s14, 0
    %p73 = por %p71, %p72
    %p74 = scmp.ne.s32.totalorder %s66, %s68
    %p75 = scmp.eq.s32.totalorder %s19, 17
    %p76 = por %p74, %p75
    %p77 = scmp.ne.s32.totalorder %s68, %s69
    %p78 = scmp.eq.s32.totalorder %s19, 0
    %p79 = por %p77, %p78
    %p80 = scmp.ne.s32.totalorder %s68, %s69
    %p81 = scmp.eq.s32.totalorder %s20, 17
    %p82 = por %p80, %p81
    %p84 = scmp.ne.s32.totalorder %s69, %s83
    %p85 = scmp.eq.s32.totalorder %s20, 0
    %p86 = por %p84, %p85
    %s88 = sadd.s32 %s87, 1
    %p91 = scmp.eq.s32.totalorder %s14, 17
    %p92 = scmp.ne.s32.totalorder %s87, %s89
    %p93 = scmp.eq.s32.totalorder %s14, 0
    %p94 = por %p92, %p93
    %p95 = scmp.ne.s32.totalorder %s87, %s89
    %p96 = scmp.eq.s32.totalorder %s19, 17
    %p97 = por %p95, %p96
    %p98 = scmp.ne.s32.totalorder %s89, %s90
    %p99 = scmp.eq.s32.totalorder %s19, 0
    %p100 = por %p98, %p99
    %p101 = scmp.ne.s32.totalorder %s89, %s90
    %p102 = scmp.eq.s32.totalorder %s20, 17
    %p103 = por %p101, %p102
    %p105 = scmp.ne.s32.totalorder %s90, %s104
    %p106 = scmp.eq.s32.totalorder %s20, 0
    %p107 = por %p105, %p106
    %s109 = sadd.s32 %s108, 1
    %p112 = scmp.eq.s32.totalorder %s14, 17
    %p113 = scmp.ne.s32.totalorder %s108, %s110
    %p114 = scmp.eq.s32.totalorder %s14, 0
    %p115 = por %p113, %p114
    %p116 = scmp.ne.s32.totalorder %s108, %s110
    %p117 = scmp.eq.s32.totalorder %s19, 17
    %p118 = por %p116, %p117
    %p119 = scmp.ne.s32.totalorder %s110, %s111
    %p120 = scmp.eq.s32.totalorder %s19, 0
    %p121 = por %p119, %p120
    %p122 = scmp.ne.s32.totalorder %s110, %s111
    %p123 = scmp.eq.s32.totalorder %s20, 17
    %p124 = por %p122, %p123
    %p126 = scmp.ne.s32.totalorder %s111, %s125
    %p127 = scmp.eq.s32.totalorder %s20, 0
    %p128 = por %p126, %p127
    %s130 = sadd.s32 %s129, 1
    %p133 = scmp.eq.s32.totalorder %s14, 17
    %p134 = scmp.ne.s32.totalorder %s129, %s131
    %p135 = scmp.eq.s32.totalorder %s14, 0
    %p136 = por %p134, %p135
    %p137 = scmp.ne.s32.totalorder %s129, %s131
    %p138 = scmp.eq.s32.totalorder %s19, 17
    %p139 = por %p137, %p138
    %p140 = scmp.ne.s32.totalorder %s131, %s132
    %p141 = scmp.eq.s32.totalorder %s19, 0
    %p142 = por %p140, %p141
    %p143 = scmp.ne.s32.totalorder %s131, %s132
    %p144 = scmp.eq.s32.totalorder %s20, 17
    %p145 = por %p143, %p144
    %p147 = scmp.ne.s32.totalorder %s132, %s146
    %p148 = scmp.eq.s32.totalorder %s20, 0
    %p149 = por %p147, %p148
    %s150 = ssub.s32 %s22, 1
    %p151 = scmp.gt.s32.totalorder %s150, 0
    %s152 = scalar_select %p151, %s150, 0
    %s153 = ssub.s32 %s29, 1
    %p154 = scmp.gt.s32.totalorder %s153, 0
    %s155 = scalar_select %p154, %s153, 0
    %s156 = ssub.s32 %s21, %s33
    %s157 = ssub.s32 %s152, %s155
    %s158 = sor.u32 %s156, %s157
    %p159 = scmp.eq.s32.totalorder %s158, 0
    %s161 = sadd.s32 %s160, 1
    %s162 = scalar_select %p159, %s160, %s161
    %p165 = pneg %p159
    %p166 = scmp.eq.s32.totalorder %s14, 17
    %p167 = por %p165, %p166
    %p168 = scmp.ne.s32.totalorder %s160, %s163
    %p169 = scmp.eq.s32.totalorder %s14, 0
    %p170 = por %p168, %p169
    %p171 = scmp.ne.s32.totalorder %s160, %s163
    %p172 = scmp.eq.s32.totalorder %s19, 17
    %p173 = por %p171, %p172
    %p174 = scmp.ne.s32.totalorder %s163, %s164
    %p175 = scmp.eq.s32.totalorder %s19, 0
    %p176 = por %p174, %p175
    %p177 = scmp.ne.s32.totalorder %s163, %s164
    %p178 = scmp.eq.s32.totalorder %s20, 17
    %p179 = por %p177, %p178
    %p181 = scmp.ne.s32.totalorder %s164, %s180
    %p182 = scmp.eq.s32.totalorder %s20, 0
    %p183 = por %p181, %p182
    %s184 = ssub.s32 %s21, %s33
    %p185 = scmp.eq.s32.totalorder %s184, 0
    %s187 = sadd.s32 %s186, 1
    %s188 = scalar_select %p185, %s186, %s187
    %p191 = pneg %p185
    %p192 = scmp.eq.s32.totalorder %s14, 17
    %p193 = por %p191, %p192
    %p194 = scmp.ne.s32.totalorder %s186, %s189
    %p195 = scmp.eq.s32.totalorder %s14, 0
    %p196 = por %p194, %p195
    %p197 = scmp.ne.s32.totalorder %s186, %s189
    %p198 = scmp.eq.s32.totalorder %s19, 17
    %p199 = por %p197, %p198
    %p200 = scmp.ne.s32.totalorder %s189, %s190
    %p201 = scmp.eq.s32.totalorder %s19, 0
    %p202 = por %p200, %p201
    %p203 = scmp.ne.s32.totalorder %s189, %s190
    %p204 = scmp.eq.s32.totalorder %s20, 17
    %p205 = por %p203, %p204
    %p207 = scmp.ne.s32.totalorder %s190, %s206
    %p208 = scmp.eq.s32.totalorder %s20, 0
    %p209 = por %p207, %p208
    %s210 = ssub.s32 %s21, %s33
    %p211 = scmp.eq.s32.totalorder %s210, 0
    %s213 = sadd.s32 %s212, 1
    %s214 = scalar_select %p211, %s212, %s213
    %p217 = pneg %p211
    %p218 = scmp.eq.s32.totalorder %s14, 17
    %p219 = por %p217, %p218
    %p220 = scmp.ne.s32.totalorder %s212, %s215
    %p221 = scmp.eq.s32.totalorder %s14, 0
    %p222 = por %p220, %p221
    %p223 = scmp.ne.s32.totalorder %s212, %s215
    %p224 = scmp.eq.s32.totalorder %s19, 17
    %p225 = por %p223, %p224
    %p226 = scmp.ne.s32.totalorder %s215, %s216
    %p227 = scmp.eq.s32.totalorder %s19, 0
    %p228 = por %p226, %p227
    %p229 = scmp.ne.s32.totalorder %s215, %s216
    %p230 = scmp.eq.s32.totalorder %s20, 17
    %p231 = por %p229, %p230
    %p233 = scmp.ne.s32.totalorder %s216, %s232
    %p234 = scmp.eq.s32.totalorder %s20, 0
    %p235 = por %p233, %p234
    %p236 = scmp.le.s32.totalorder 1, %s14
    %p237 = scmp.lt.s32.totalorder %s14, 19
    %p238 = pnand %p236, %p237
    %p239 = pneg %p238
    // Predicated region
    $region9: #{residual_block3.3} parent=5 // pred_check
      _
    $region10: #{residual_block3.3} parent=5 // pred_check_branch
      %241 = sbr.rel (%p238) target = $region12
    $region11: #{residual_block3.3} parent=5 // pred_region
      %s242 = ssub.s32 %s14, 1
      // Predicated region
      $region13: #{residual_block3.3} parent=11 // pred_check
        %p243 = pneg %p79
      $region14: #{residual_block3.3} parent=11 // pred_check_branch
        %245 = sbr.rel (%p243) target = $region16
      $region15: #{residual_block3.3} parent=11 // pred_region
        _
      $region16: #{residual_block3.3} parent=11 // pred_fallthru
        _
      // Predicated region
      $region17: #{residual_block3.3} parent=11 // pred_check
        %p246 = pneg %p100
      $region18: #{residual_block3.3} parent=11 // pred_check_branch
        %248 = sbr.rel (%p246) target = $region20
      $region19: #{residual_block3.3} parent=11 // pred_region
        _
      $region20: #{residual_block3.3} parent=11 // pred_fallthru
        _
      // Predicated region
      $region21: #{residual_block3.3} parent=11 // pred_check
        %p249 = pneg %p121
      $region22: #{residual_block3.3} parent=11 // pred_check_branch
        %251 = sbr.rel (%p249) target = $region24
      $region23: #{residual_block3.3} parent=11 // pred_region
        _
      $region24: #{residual_block3.3} parent=11 // pred_fallthru
        _
      // Predicated region
      $region25: #{residual_block3.3} parent=11 // pred_check
        %p252 = pneg %p142
      $region26: #{residual_block3.3} parent=11 // pred_check_branch
        %254 = sbr.rel (%p252) target = $region28
      $region27: #{residual_block3.3} parent=11 // pred_region
        _
      $region28: #{residual_block3.3} parent=11 // pred_fallthru
        _
    $region12: #{residual_block3.3} parent=5 // pred_fallthru
      _
    %p255 = scmp.lt.s32.totalorder %s14, 18
    // Predicated region
    $region29: #{residual_block3.3} parent=5 // pred_check
      %p256 = pneg %p255
    $region30: #{residual_block3.3} parent=5 // pred_check_branch
      %258 = sbr.rel (%p256) target = $region32
    $region31: #{residual_block3.3} parent=5 // pred_region
      // Predicated region
      $region33: #{residual_block3.3} parent=31 // pred_check
        %p259 = pneg %p52
      $region34: #{residual_block3.3} parent=31 // pred_check_branch
        %261 = sbr.rel (%p259) target = $region36
      $region35: #{residual_block3.3} parent=31 // pred_region
        %p262 = scmp.lt.s32.totalorder %s22, 7
        %s263 = scalar_select %p262, %s22, 7
        %p264 = scmp.lt.s32.totalorder %s21, 1
        %s265 = scalar_select %p264, %s21, 1
        %p266 = scmp.lt.s32.totalorder %s263, 7
        %s267 = scalar_select %p266, %s263, 7
        %s268 = smul.addr %s265, 8
        %s269 = sadd.s32 %s267, %s268
        %s270 = smul.addr %s269, 8
        %s271 = scalar_lea.vmem %s0, %s270
        %p272 = scmp.lt.s32.totalorder %s22, 7
        %s273 = scalar_select %p272, %s22, 7
      $region36: #{residual_block3.3} parent=31 // pred_fallthru
        _
    $region32: #{residual_block3.3} parent=5 // pred_fallthru
      _
    %p274 = scmp.le.s32.totalorder 1, %s14
    %p275 = scmp.lt.s32.totalorder %s14, 19
    %p276 = pnand %p274, %p275
    %p277 = pneg %p276
    // Predicated region
    $region37: #{residual_block3.3} parent=5 // pred_check
      _
    $region38: #{residual_block3.3} parent=5 // pred_check_branch
      %279 = sbr.rel (%p276) target = $region40
    $region39: #{residual_block3.3} parent=5 // pred_region
      %s280 = ssub.s32 %s14, 1
      %p281 = scmp.lt.s32.totalorder %s24, 7
      %s282 = scalar_select %p281, %s24, 7
      %p283 = scmp.lt.s32.totalorder %s23, 1
      %s284 = scalar_select %p283, %s23, 1
      %p285 = scmp.lt.s32.totalorder %s282, 7
      %s286 = scalar_select %p285, %s282, 7
      %s287 = smul.addr %s284, 8
      %s288 = sadd.s32 %s286, %s287
      %s289 = smul.addr %s288, 8
      %s290 = scalar_lea.vmem %s0, %s289
      %p291 = pneg %p58
      %p292 = pneg %p55
      %p293 = pneg %p79
      %p294 = pneg %p76
      %p295 = pneg %p100
      %p296 = pneg %p97
      %p297 = pneg %p121
      %p298 = pneg %p118
      %p299 = pneg %p142
      %p300 = pneg %p139
      %p301 = pneg %p176
      %p302 = pneg %p173
      %s303 = ssub.s32 %s24, 1
      %p304 = scmp.gt.s32.totalorder %s303, 0
      %s305 = scalar_select %p304, %s303, 0
      %p306 = scmp.lt.s32.totalorder %s23, 1
      %s307 = scalar_select %p306, %s23, 1
      %p308 = scmp.lt.s32.totalorder %s305, 7
      %s309 = scalar_select %p308, %s305, 7
      %s310 = smul.addr %s307, 8
      %s311 = sadd.s32 %s309, %s310
      %s312 = smul.addr %s311, 8
      %s313 = scalar_lea.vmem %s5, %s312
      %p314 = pneg %p202
      %p315 = pneg %p199
      %p316 = scmp.lt.s32.totalorder %s23, 1
      %s317 = scalar_select %p316, %s23, 1
      %s318 = smul.addr %s317, 8
      %s319 = scalar_lea.vmem %s6, %s318
      %p320 = pneg %p228
      %p321 = pneg %p225
      %p322 = scmp.lt.s32.totalorder %s23, 1
      %s323 = scalar_select %p322, %s23, 1
      %s324 = smul.addr %s323, 8
      %s325 = scalar_lea.vmem %s7, %s324
      %p326 = scmp.lt.s32.totalorder %s24, 7
      %s327 = scalar_select %p326, %s24, 7
      %p328 = scmp.lt.s32.totalorder %s23, 1
      %s329 = scalar_select %p328, %s23, 1
      %p330 = scmp.lt.s32.totalorder %s327, 7
      %s331 = scalar_select %p330, %s327, 7
      %s332 = smul.addr %s329, 8
      %s333 = sadd.s32 %s331, %s332
      %s334 = smul.addr %s333, 8
      %s335 = scalar_lea.vmem %s0, %s334
      %p336 = scmp.lt.s32.totalorder %s24, 7
      %s337 = scalar_select %p336, %s24, 7
      %s338 = ssub.s32 %s24, 1
      %p339 = scmp.gt.s32.totalorder %s338, 0
      %s340 = scalar_select %p339, %s338, 0
      %p341 = scmp.lt.s32.totalorder %s23, 1
      %s342 = scalar_select %p341, %s23, 1
      %p343 = scmp.lt.s32.totalorder %s340, 7
      %s344 = scalar_select %p343, %s340, 7
      %s345 = smul.addr %s342, 8
      %s346 = sadd.s32 %s344, %s345
      %s347 = smul.addr %s346, 8
      %s348 = scalar_lea.vmem %s5, %s347
      %s349 = ssub.s32 %s24, 1
      %p350 = scmp.gt.s32.totalorder %s349, 0
      %s351 = scalar_select %p350, %s349, 0
      %p352 = scmp.lt.s32.totalorder %s23, 1
      %s353 = scalar_select %p352, %s23, 1
      %s354 = smul.addr %s353, 8
      %s355 = scalar_lea.vmem %s6, %s354
      %p356 = scmp.lt.s32.totalorder %s23, 1
      %s357 = scalar_select %p356, %s23, 1
      %s358 = smul.addr %s357, 8
      %s359 = scalar_lea.vmem %s7, %s358
      %p360 = scmp.eq.s32.totalorder %s24, 0
      // Predicated region
      $region41: #{residual_block3.3} parent=39 // pred_check
        %p361 = pneg %p360
      $region42: #{residual_block3.3} parent=39 // pred_check_branch
        %363 = sbr.rel (%p361) target = $region44
      $region43: #{residual_block3.3} parent=39 // pred_region
        %364 = vst [vmem:[#allocation2] sm:$0xff] 0.0
        %365 = vst [vmem:[#allocation2 + $0x8] sm:$0xff] 0.0
        %366 = vst [vmem:[#allocation2 + $0x10] sm:$0xff] 0.0
        %367 = vst [vmem:[#allocation2 + $0x18] sm:$0xff] 0.0
        %368 = vst [vmem:[#allocation2 + $0x20] sm:$0xff] 0.0
        %369 = vst [vmem:[#allocation2 + $0x28] sm:$0xff] 0.0
        %370 = vst [vmem:[#allocation2 + $0x30] sm:$0xff] 0.0
        %371 = vst [vmem:[#allocation2 + $0x38] sm:$0xff] 0.0
        %372 = vst [vmem:[#allocation2 + $0x40] sm:$0xff] 0.0
        %373 = vst [vmem:[#allocation2 + $0x48] sm:$0xff] 0.0
        %374 = vst [vmem:[#allocation2 + $0x50] sm:$0xff] 0.0
        %375 = vst [vmem:[#allocation2 + $0x58] sm:$0xff] 0.0
        %376 = vst [vmem:[#allocation2 + $0x60] sm:$0xff] 0.0
        %377 = vst [vmem:[#allocation2 + $0x68] sm:$0xff] 0.0
        %378 = vst [vmem:[#allocation2 + $0x70] sm:$0xff] 0.0
        %379 = vst [vmem:[#allocation2 + $0x78] sm:$0xff] 0.0
        %380 = vst [vmem:[#allocation2 + $0x80] sm:$0xff] 0.0
        %381 = vst [vmem:[#allocation2 + $0x88] sm:$0xff] 0.0
        %382 = vst [vmem:[#allocation2 + $0x90] sm:$0xff] 0.0
        %383 = vst [vmem:[#allocation2 + $0x98] sm:$0xff] 0.0
        %384 = vst [vmem:[#allocation2 + $0xa0] sm:$0xff] 0.0
        %385 = vst [vmem:[#allocation2 + $0xa8] sm:$0xff] 0.0
        %386 = vst [vmem:[#allocation2 + $0xb0] sm:$0xff] 0.0
        %387 = vst [vmem:[#allocation2 + $0xb8] sm:$0xff] 0.0
        %388 = vst [vmem:[#allocation2 + $0xc0] sm:$0xff] 0.0
        %389 = vst [vmem:[#allocation2 + $0xc8] sm:$0xff] 0.0
        %390 = vst [vmem:[#allocation2 + $0xd0] sm:$0xff] 0.0
        %391 = vst [vmem:[#allocation3] sm:$0xff] 0.0
        %392 = vst [vmem:[#allocation3 + $0x8] sm:$0xff] 0.0
        %vm393 = vcmask 7168
        %394 = vst.msk [vmem:[%s355] sm:$0xff] %vm393, 0.0
        %395 = vst.msk [vmem:[%s359] sm:$0xff] %vm393, 0.0
      $region44: #{residual_block3.3} parent=39 // pred_fallthru
        _
      %p396 = scmp.gt.s32.totalorder %s24, 0
      // Predicated region
      $region45: #{residual_block3.3} parent=39 // pred_check
        %p397 = pneg %p396
      $region46: #{residual_block3.3} parent=39 // pred_check_branch
        %399 = sbr.rel (%p397) target = $region48
      $region47: #{residual_block3.3} parent=39 // pred_region
        %v400 = vld [vmem:[#allocation2 + $0x48] sm:$0xff]
        %v401 = vld [vmem:[#allocation2 + $0x50] sm:$0xff]
        %v402 = vld [vmem:[#allocation2 + $0x58] sm:$0xff]
        %v403 = vld [vmem:[#allocation2 + $0x60] sm:$0xff]
        %v404 = vld [vmem:[#allocation2 + $0x68] sm:$0xff]
        %v405 = vld [vmem:[#allocation2 + $0x70] sm:$0xff]
        %v406 = vld [vmem:[#allocation2 + $0x78] sm:$0xff]
        %v407 = vld [vmem:[#allocation2 + $0x80] sm:$0xff]
        %v408 = vld [vmem:[#allocation2 + $0x88] sm:$0xff]
        %409 = vst [vmem:[#allocation2] sm:$0xff] %v400
        %410 = vst [vmem:[#allocation2 + $0x8] sm:$0xff] %v401
        %411 = vst [vmem:[#allocation2 + $0x10] sm:$0xff] %v402
        %412 = vst [vmem:[#allocation2 + $0x18] sm:$0xff] %v403
        %413 = vst [vmem:[#allocation2 + $0x20] sm:$0xff] %v404
        %414 = vst [vmem:[#allocation2 + $0x28] sm:$0xff] %v405
        %415 = vst [vmem:[#allocation2 + $0x30] sm:$0xff] %v406
        %416 = vst [vmem:[#allocation2 + $0x38] sm:$0xff] %v407
        %417 = vst [vmem:[#allocation2 + $0x40] sm:$0xff] %v408
        %v418 = vld [vmem:[#allocation2 + $0x90] sm:$0xff]
        %v419 = vld [vmem:[#allocation2 + $0x98] sm:$0xff]
        %v420 = vld [vmem:[#allocation2 + $0xa0] sm:$0xff]
        %v421 = vld [vmem:[#allocation2 + $0xa8] sm:$0xff]
        %v422 = vld [vmem:[#allocation2 + $0xb0] sm:$0xff]
        %v423 = vld [vmem:[#allocation2 + $0xb8] sm:$0xff]
        %v424 = vld [vmem:[#allocation2 + $0xc0] sm:$0xff]
        %v425 = vld [vmem:[#allocation2 + $0xc8] sm:$0xff]
        %v426 = vld [vmem:[#allocation2 + $0xd0] sm:$0xff]
        %427 = vst [vmem:[#allocation2 + $0x48] sm:$0xff] %v418
        %428 = vst [vmem:[#allocation2 + $0x50] sm:$0xff] %v419
        %429 = vst [vmem:[#allocation2 + $0x58] sm:$0xff] %v420
        %430 = vst [vmem:[#allocation2 + $0x60] sm:$0xff] %v421
        %431 = vst [vmem:[#allocation2 + $0x68] sm:$0xff] %v422
        %432 = vst [vmem:[#allocation2 + $0x70] sm:$0xff] %v423
        %433 = vst [vmem:[#allocation2 + $0x78] sm:$0xff] %v424
        %434 = vst [vmem:[#allocation2 + $0x80] sm:$0xff] %v425
        %435 = vst [vmem:[#allocation2 + $0x88] sm:$0xff] %v426
      $region48: #{residual_block3.3} parent=39 // pred_fallthru
        _
      %v436 = vld [vmem:[%s335] sm:$0xff]
      %p437 = scmp.lt.s32.totalorder %s24, 8
      %s438 = scalar_select %p437, 1, 0
      %s439 = scvt.s32.f32 %s438
      %v440 = vld [vmem:[%s3] sm:$0x1]
      %v441 = vstv %s439
      %v442 = vmul.f32 %v440, %v441
      %v444 = vlaneseq
      %v445 = vshrl.u32 %v444, 7
      %v446 = vsub.s32 0, %v445
      %v447 = vrot.slane %v442, %v446
      %v449 = vmul.f32 %v436, %v447
      %451 = vrot.lane.b32.xlu0 %v449, 11
      %v452 = vpop.permute.xlu0 %451
      %vm454 = vcmask 1047640
      %455 = vst.msk [vmem:[#allocation3] sm:$0xff] %vm454, %v452
      %vm456 = vcmask 89088
      %457 = vst.msk [vmem:[#allocation3 + $0x8] sm:$0xff] %vm456, %v452
      %v458 = vld [vmem:[#allocation3] sm:$0xff]
      %459 = vst [vmem:[#allocation2 + $0x90] sm:$0xff] %v458
      %v460 = vld [vmem:[#allocation3] sm:$0xff]
      %v461 = vld [vmem:[#allocation3 + $0x8] sm:$0xff]
      %464 = vrot.lane.b32.xlu0 %v460, 127
      %v465 = vpop.permute.xlu0 %464
      %466 = vrot.lane.b32.xlu0 %v461, 127
      %v467 = vpop.permute.xlu0 %466
      %vm468 = vcmask 1039360
      %v469 = vsel %vm468, %v465, %v467
      %471 = vst [vmem:[#allocation2 + $0x98] sm:$0xff] %v469
      %v472 = vld [vmem:[#allocation3] sm:$0xff]
      %v473 = vld [vmem:[#allocation3 + $0x8] sm:$0xff]
      %476 = vrot.lane.b32.xlu0 %v472, 126
      %v477 = vpop.permute.xlu0 %476
      %478 = vrot.lane.b32.xlu0 %v473, 126
      %v479 = vpop.permute.xlu0 %478
      %vm480 = vcmask 1031168
      %v481 = vsel %vm480, %v477, %v479
      %483 = vst [vmem:[#allocation2 + $0xa0] sm:$0xff] %v481
      %v484 = vld [vmem:[#allocation3] sm:$0xff]
      %v485 = vld [vmem:[#allocation3 + $0x8] sm:$0xff]
      %488 = vrot.lane.b32.xlu0 %v484, 118
      %v489 = vpop.permute.xlu0 %488
      %490 = vrot.lane.b32.xlu0 %v485, 118
      %v491 = vpop.permute.xlu0 %490
      %vm492 = vcmask 965632
      %v493 = vsel %vm492, %v489, %v491
      %495 = vst [vmem:[#allocation2 + $0xa8] sm:$0xff] %v493
      %v496 = vld [vmem:[#allocation3] sm:$0xff]
      %v497 = vld [vmem:[#allocation3 + $0x8] sm:$0xff]
      %500 = vrot.lane.b32.xlu0 %v496, 117
      %v501 = vpop.permute.xlu0 %500
      %502 = vrot.lane.b32.xlu0 %v497, 117
      %v503 = vpop.permute.xlu0 %502
      %vm504 = vcmask 957440
      %v505 = vsel %vm504, %v501, %v503
      %507 = vst [vmem:[#allocation2 + $0xb0] sm:$0xff] %v505
      %v508 = vld [vmem:[#allocation3] sm:$0xff]
      %v509 = vld [vmem:[#allocation3 + $0x8] sm:$0xff]
      %512 = vrot.lane.b32.xlu0 %v508, 116
      %v513 = vpop.permute.xlu0 %512
      %514 = vrot.lane.b32.xlu0 %v509, 116
      %v515 = vpop.permute.xlu0 %514
      %vm516 = vcmask 949248
      %v517 = vsel %vm516, %v513, %v515
      %519 = vst [vmem:[#allocation2 + $0xb8] sm:$0xff] %v517
      %v520 = vld [vmem:[#allocation3] sm:$0xff]
      %v521 = vld [vmem:[#allocation3 + $0x8] sm:$0xff]
      %524 = vrot.lane.b32.xlu0 %v520, 108
      %v525 = vpop.permute.xlu0 %524
      %526 = vrot.lane.b32.xlu0 %v521, 108
      %v527 = vpop.permute.xlu0 %526
      %vm528 = vcmask 883712
      %v529 = vsel %vm528, %v525, %v527
      %531 = vst [vmem:[#allocation2 + $0xc0] sm:$0xff] %v529
      %v532 = vld [vmem:[#allocation3] sm:$0xff]
      %v533 = vld [vmem:[#allocation3 + $0x8] sm:$0xff]
      %536 = vrot.lane.b32.xlu0 %v532, 107
      %v537 = vpop.permute.xlu0 %536
      %538 = vrot.lane.b32.xlu0 %v533, 107
      %v539 = vpop.permute.xlu0 %538
      %vm540 = vcmask 875520
      %v541 = vsel %vm540, %v537, %v539
      %543 = vst [vmem:[#allocation2 + $0xc8] sm:$0xff] %v541
      %v544 = vld [vmem:[#allocation3] sm:$0xff]
      %v545 = vld [vmem:[#allocation3 + $0x8] sm:$0xff]
      %548 = vrot.lane.b32.xlu0 %v544, 106
      %v549 = vpop.permute.xlu0 %548
      %550 = vrot.lane.b32.xlu0 %v545, 106
      %v551 = vpop.permute.xlu0 %550
      %vm552 = vcmask 867328
      %v553 = vsel %vm552, %v549, %v551
      %555 = vst [vmem:[#allocation2 + $0xd0] sm:$0xff] %v553
      %p556 = scmp.ge.s32.totalorder %s24, 1
      // Predicated region
      $region49: #{residual_block3.3} parent=39 // pred_check
        %p557 = pneg %p556
      $region50: #{residual_block3.3} parent=39 // pred_check_branch
        %559 = sbr.rel (%p557) target = $region52
      $region51: #{residual_block3.3} parent=39 // pred_region
        %v560 = vld [vmem:[%s4] sm:$0xff]
        %v561 = vld [vmem:[%s4 + $0x8] sm:$0xff]
        %v562 = vld [vmem:[#allocation2] sm:$0xff]
        %v563 = vld [vmem:[#allocation2 + $0x8] sm:$0xff]
        %v564 = vld [vmem:[#allocation2 + $0x10] sm:$0xff]
        %v565 = vld [vmem:[#allocation2 + $0x18] sm:$0xff]
        %v566 = vld [vmem:[#allocation2 + $0x20] sm:$0xff]
        %v567 = vld [vmem:[#allocation2 + $0x28] sm:$0xff]
        %v568 = vld [vmem:[#allocation2 + $0x30] sm:$0xff]
        %v569 = vld [vmem:[#allocation2 + $0x38] sm:$0xff]
        %v570 = vld [vmem:[#allocation2 + $0x40] sm:$0xff]
        %v571 = vld [vmem:[#allocation2 + $0x48] sm:$0xff]
        %v572 = vld [vmem:[#allocation2 + $0x50] sm:$0xff]
        %v573 = vld [vmem:[#allocation2 + $0x58] sm:$0xff]
        %v574 = vld [vmem:[#allocation2 + $0x60] sm:$0xff]
        %v575 = vld [vmem:[#allocation2 + $0x68] sm:$0xff]
        %v576 = vld [vmem:[#allocation2 + $0x70] sm:$0xff]
        %v577 = vld [vmem:[#allocation2 + $0x78] sm:$0xff]
        %v578 = vld [vmem:[#allocation2 + $0x80] sm:$0xff]
        %v579 = vld [vmem:[#allocation2 + $0x88] sm:$0xff]
        %v580 = vld [vmem:[#allocation2 + $0x90] sm:$0xff]
        %v581 = vld [vmem:[#allocation2 + $0x98] sm:$0xff]
        %v582 = vld [vmem:[#allocation2 + $0xa0] sm:$0xff]
        %v583 = vld [vmem:[#allocation2 + $0xa8] sm:$0xff]
        %v584 = vld [vmem:[#allocation2 + $0xb0] sm:$0xff]
        %v585 = vld [vmem:[#allocation2 + $0xb8] sm:$0xff]
        %v586 = vld [vmem:[#allocation2 + $0xc0] sm:$0xff]
        %v587 = vld [vmem:[#allocation2 + $0xc8] sm:$0xff]
        %v588 = vld [vmem:[#allocation2 + $0xd0] sm:$0xff]
        %vm589 = vcmask 719872
        %v591 = vsel %vm589, %v561, 0
        %593 = vmatprep.subr.mxu0 0.0
        %594 = vmatpush1.msra.mxu0 %v577
        %595 = vmatprep.subr.mxu0 0.0
        %596 = vmatpush1.msra.mxu0 %v576
        %597 = vmatprep.subr.mxu0 0.0
        %598 = vmatpush1.msra.mxu0 %v575
        %599 = vmatprep.subr.mxu0 0.0
        %600 = vmatpush1.msra.mxu0 %v574
        %601 = vmatprep.subr.mxu0 0.0
        %602 = vmatpush1.msra.mxu0 %v573
        %603 = vmatprep.subr.mxu0 0.0
        %604 = vmatpush1.msra.mxu0 %v572
        %605 = vmatprep.subr.mxu0 0.0
        %606 = vmatpush1.msra.mxu0 %v571
        %607 = vmatprep.subr.mxu0 0.0
        %608 = vmatpush1.msra.mxu0 %v570
        %609 = vmatprep.subr.mxu0 0.0
        %610 = vmatpush1.msra.mxu0 %v569
        %611 = vmatprep.subr.mxu0 0.0
        %612 = vmatpush1.msra.mxu0 %v568
        %613 = vmatprep.subr.mxu0 0.0
        %614 = vmatpush1.msra.mxu0 %v567
        %615 = vmatprep.subr.mxu0 0.0
        %616 = vmatpush1.msra.mxu0 %v566
        %617 = vmatprep.subr.mxu0 0.0
        %618 = vmatpush1.msra.mxu0 %v565
        %619 = vmatprep.subr.mxu0 0.0
        %620 = vmatpush1.msra.mxu0 %v564
        %621 = vmatprep.subr.mxu0 0.0
        %622 = vmatpush1.msra.mxu0 %v563
        %623 = vmatprep.subr.mxu0 0.0
        %624 = vmatpush1.msra.mxu0 %v562
        %625 = vmatprep.subr.mxu0 0.0
        %626 = vmatpush2.msra.mxu0 0.0
        %627 = vmatprep.subr.mxu0 0.0
        %628 = vmatpush2.msra.mxu0 0.0
        %629 = vmatprep.subr.mxu0 0.0
        %630 = vmatpush2.msra.mxu0 0.0
        %631 = vmatprep.subr.mxu0 0.0
        %632 = vmatpush2.msra.mxu0 0.0
        %633 = vmatprep.subr.mxu0 0.0
        %634 = vmatpush2.msra.mxu0 0.0
        %635 = vmatprep.subr.mxu0 0.0
        %636 = vmatpush2.msra.mxu0 %v588
        %637 = vmatprep.subr.mxu0 0.0
        %638 = vmatpush2.msra.mxu0 %v587
        %639 = vmatprep.subr.mxu0 0.0
        %640 = vmatpush2.msra.mxu0 %v586
        %641 = vmatprep.subr.mxu0 0.0
        %642 = vmatpush2.msra.mxu0 %v585
        %643 = vmatprep.subr.mxu0 0.0
        %644 = vmatpush2.msra.mxu0 %v584
        %645 = vmatprep.subr.mxu0 0.0
        %646 = vmatpush2.msra.mxu0 %v583
        %647 = vmatprep.subr.mxu0 0.0
        %648 = vmatpush2.msra.mxu0 %v582
        %649 = vmatprep.subr.mxu0 0.0
        %650 = vmatpush2.msra.mxu0 %v581
        %651 = vmatprep.subr.mxu0 0.0
        %652 = vmatpush2.msra.mxu0 %v580
        %653 = vmatprep.subr.mxu0 0.0
        %654 = vmatpush2.msra.mxu0 %v579
        %655 = vmatprep.subr.mxu0 0.0
        %656 = vmatpush2.msra.mxu0 %v578
        %657 = vmatprep.mubr.f32.mxu0 %v591
        %658 = vmatmul.mubr.f32.gmra.mxu0 %v560
        %v659 = vpop.f32.mrf.mxu0
        %v660 = vadd.f32 0.0, %v659
        %v661 = vpop.f32.mrf.mxu0
        %662 = vdwg.mxu0
        %663 = vst [vmem:[%s348] sm:$0xff] %v660
        %v664 = vld [vmem:[%s3] sm:$0x1]
        %v666 = vlaneseq
        %v667 = vshrl.u32 %v666, 7
        %v668 = vsub.s32 0, %v667
        %v669 = vrot.slane %v664, %v668
        %v671 = vmul.f32 %v660, %v669
        %v672 = vld [vmem:[%s355] sm:$0xff]
        %673 = vadd.xlane.f32.xlu0 %v671
        %v674 = vpop.xlane.xlu0 %673
        %v675 = vadd.f32 %v672, %v674
        %vm676 = vcmask 7168
        %677 = vst.msk [vmem:[%s355] sm:$0xff] %vm676, %v675
        %v678 = vld [vmem:[%s359] sm:$0xff]
        %v679 = vmul.f32 %v671, %v671
        %680 = vadd.xlane.f32.xlu0 %v679
        %v681 = vpop.xlane.xlu0 %680
        %v682 = vadd.f32 %v678, %v681
        %683 = vst.msk [vmem:[%s359] sm:$0xff] %vm676, %v682
      $region52: #{residual_block3.3} parent=39 // pred_fallthru
        _
      %s684 = ssub.s32 %s24, 1
      %p685 = scmp.gt.s32.totalorder %s684, 0
      %s686 = scalar_select %p685, %s684, 0
      %p687 = scmp.lt.s32.totalorder %s23, 1
      %s688 = scalar_select %p687, %s23, 1
      %p689 = scmp.lt.s32.totalorder %s686, 7
      %s690 = scalar_select %p689, %s686, 7
      %s691 = smul.addr %s688, 8
      %s692 = sadd.s32 %s690, %s691
      %s693 = smul.addr %s692, 8
      %s694 = scalar_lea.vmem %s5, %s693
      %p695 = scmp.lt.s32.totalorder %s23, 1
      %s696 = scalar_select %p695, %s23, 1
      %s697 = smul.addr %s696, 8
      %s698 = scalar_lea.vmem %s6, %s697
      %p699 = scmp.lt.s32.totalorder %s23, 1
      %s700 = scalar_select %p699, %s23, 1
      %s701 = smul.addr %s700, 8
      %s702 = scalar_lea.vmem %s7, %s701
      // Predicated region
      $region53: #{residual_block3.3} parent=39 // pred_check
        %p703 = pneg %p173
      $region54: #{residual_block3.3} parent=39 // pred_check_branch
        %705 = sbr.rel (%p703) target = $region56
      $region55: #{residual_block3.3} parent=39 // pred_region
        %s706 = ssub.s32 %s24, 1
        %p707 = scmp.gt.s32.totalorder %s706, 0
        %s708 = scalar_select %p707, %s706, 0
      $region56: #{residual_block3.3} parent=39 // pred_fallthru
        _
      // Predicated region
      $region57: #{residual_block3.3} parent=39 // pred_check
        %p709 = pneg %p199
      $region58: #{residual_block3.3} parent=39 // pred_check_branch
        %711 = sbr.rel (%p709) target = $region60
      $region59: #{residual_block3.3} parent=39 // pred_region
        _
      $region60: #{residual_block3.3} parent=39 // pred_fallthru
        _
      // Predicated region
      $region61: #{residual_block3.3} parent=39 // pred_check
        %p712 = pneg %p225
      $region62: #{residual_block3.3} parent=39 // pred_check_branch
        %714 = sbr.rel (%p712) target = $region64
      $region63: #{residual_block3.3} parent=39 // pred_region
        _
      $region64: #{residual_block3.3} parent=39 // pred_fallthru
        _
    $region40: #{residual_block3.3} parent=5 // pred_fallthru
      _
    %p715 = scmp.le.s32.totalorder 2, %s14
    // Predicated region
    $region65: #{residual_block3.3} parent=5 // pred_check
      %p716 = pneg %p715
    $region66: #{residual_block3.3} parent=5 // pred_check_branch
      %718 = sbr.rel (%p716) target = $region68
    $region67: #{residual_block3.3} parent=5 // pred_region
      %s719 = ssub.s32 %s14, 2
      // Predicated region
      $region69: #{residual_block3.3} parent=67 // pred_check
        %p720 = pneg %p179
      $region70: #{residual_block3.3} parent=67 // pred_check_branch
        %722 = sbr.rel (%p720) target = $region72
      $region71: #{residual_block3.3} parent=67 // pred_region
        %s723 = ssub.s32 %s26, 1
        %p724 = scmp.gt.s32.totalorder %s723, 0
        %s725 = scalar_select %p724, %s723, 0
        %p726 = scmp.lt.s32.totalorder %s25, 1
        %s727 = scalar_select %p726, %s25, 1
        %p728 = scmp.lt.s32.totalorder %s725, 7
        %s729 = scalar_select %p728, %s725, 7
        %s730 = smul.addr %s727, 8
        %s731 = sadd.s32 %s729, %s730
        %s732 = smul.addr %s731, 8
        %s733 = scalar_lea.vmem %s5, %s732
      $region72: #{residual_block3.3} parent=67 // pred_fallthru
        _
      // Predicated region
      $region73: #{residual_block3.3} parent=67 // pred_check
        %p734 = pneg %p205
      $region74: #{residual_block3.3} parent=67 // pred_check_branch
        %736 = sbr.rel (%p734) target = $region76
      $region75: #{residual_block3.3} parent=67 // pred_region
        %p737 = scmp.lt.s32.totalorder %s25, 1
        %s738 = scalar_select %p737, %s25, 1
        %s739 = smul.addr %s738, 8
        %s740 = scalar_lea.vmem %s6, %s739
      $region76: #{residual_block3.3} parent=67 // pred_fallthru
        _
      // Predicated region
      $region77: #{residual_block3.3} parent=67 // pred_check
        %p741 = pneg %p231
      $region78: #{residual_block3.3} parent=67 // pred_check_branch
        %743 = sbr.rel (%p741) target = $region80
      $region79: #{residual_block3.3} parent=67 // pred_region
        %p744 = scmp.lt.s32.totalorder %s25, 1
        %s745 = scalar_select %p744, %s25, 1
        %s746 = smul.addr %s745, 8
        %s747 = scalar_lea.vmem %s7, %s746
      $region80: #{residual_block3.3} parent=67 // pred_fallthru
        _
    $region68: #{residual_block3.3} parent=5 // pred_fallthru
      _
  $region6: #{residual_block3.3} parent=0 // loop_footer
    %s18 = sadd.s32 1, %s14
  $region7: #{residual_block3.3} parent=0 // loop_footer_branch
    %13 = sbr.rel target = $region3
  $region8: #{residual_block3.3} parent=0 // loop_exit
    _

// kernel: residual_block3.4
$region0: #{residual_block3.4}
  #allocation0 [shape = 'u32[]', space=smem, size = 0x4, offset = 0x4, fixed_abs, tag = 'smem constant byte address 0x4 - core index']
  #allocation1 [shape = 'u32[144,128]{1,0:T(1,128)}', space=vmem, size = 0x12000, scoped, tag = 'internal scratch']
  #allocation2 [shape = 'f32[216,128]{1,0:T(8,128)}', space=vmem, size = 0x1b000, scoped, tag = 'scratch operand']
  #allocation3 [shape = 'f32[8,256]{1,0:T(8,128)}', space=vmem, size = 0x2000, scoped, tag = 'scratch operand']
  %s0 = inlined_call_operand.vmem [shape: f32[2,8,8,128], index: 0, kind: input, shape index: {}]
  %s1 = inlined_call_operand.vmem [shape: f32[8,1], index: 1, kind: input, shape index: {}]
  %s2 = inlined_call_operand.vmem [shape: f32[8,1], index: 2, kind: input, shape index: {}]
  %s3 = inlined_call_operand.vmem [shape: f32[1,128], index: 3, kind: input, shape index: {}]
  %s4 = inlined_call_operand.vmem [shape: f32[8,216], index: 4, kind: input, shape index: {}]
  %s5 = inlined_call_operand.vmem [shape: f32[2,8,8,128], index: 5, kind: output, shape index: {0}]
  %s6 = inlined_call_operand.vmem [shape: f32[2,8,1], index: 6, kind: output, shape index: {1}]
  %s7 = inlined_call_operand.vmem [shape: f32[2,8,1], index: 7, kind: output, shape index: {2}]
  %8 = xla_tuple %s5, %s6, %s7
  %s9 = sld [smem:[#allocation0]]
  $region81: #{residual_block3.4} parent=0
    _
  %s11 = ssub.s32 1, %s9
  %s12 = scalar_select 0, %s11, %s9
  loop: start=0, step=1, limit=20
  $region2: #{residual_block3.4} parent=0 // loop_pre_header
    _
  $region3: #{residual_block3.4} parent=0 // loop_header
    %s14 = sphi 0, %s18
    %p15 = scmp.ge.s32.totalorder %s14, 20
    %s21 = sphi 0, %s33
    %s22 = sphi 0, %s29
    %s23 = sphi 0, %s21
    %s24 = sphi 0, %s22
    %s25 = sphi 0, %s23
    %s26 = sphi 0, %s24
    %s42 = sphi 0, %s44
    %s45 = sphi 0, %s42
    %s46 = sphi 0, %s45
    %s62 = sphi 0, %s46
    %s66 = sphi 0, %s66
    %s68 = sphi 0, %s66
    %s69 = sphi 0, %s68
    %s83 = sphi 0, %s69
    %s87 = sphi 0, %s87
    %s89 = sphi 0, %s87
    %s90 = sphi 0, %s89
    %s104 = sphi 0, %s90
    %s108 = sphi 0, %s108
    %s110 = sphi 0, %s108
    %s111 = sphi 0, %s110
    %s125 = sphi 0, %s111
    %s129 = sphi 0, %s129
    %s131 = sphi 0, %s129
    %s132 = sphi 0, %s131
    %s146 = sphi 0, %s132
    %s160 = sphi 0, %s162
    %s163 = sphi 0, %s160
    %s164 = sphi 0, %s163
    %s180 = sphi 0, %s164
    %s186 = sphi 0, %s188
    %s189 = sphi 0, %s186
    %s190 = sphi 0, %s189
    %s206 = sphi 0, %s190
    %s212 = sphi 0, %s214
    %s215 = sphi 0, %s212
    %s216 = sphi 0, %s215
    %s232 = sphi 0, %s216
  $region4: #{residual_block3.4} parent=0 // loop_header_branch
    %17 = sbr.rel (%p15) target = $region8
  $region5: #{residual_block3.4} parent=0 // loop_body
    %s19 = ssub.s32 %s14, 1
    %s20 = ssub.s32 %s14, 2
    %s27 = sadd.s32 1, %s22
    %p28 = scmp.ge.s32.totalorder %s27, 9
    %s29 = scalar_select %p28, 0, %s27
    %s30 = sadd.s32 1, %s21
    %s31 = scalar_select %p28, %s30, %s21
    %p32 = scmp.ge.s32.totalorder %s31, 2
    %s33 = scalar_select %p32, 0, %s31
    %p34 = scmp.lt.s32.totalorder %s22, 7
    %s35 = scalar_select %p34, %s22, 7
    %p36 = scmp.lt.s32.totalorder %s29, 7
    %s37 = scalar_select %p36, %s29, 7
    %s38 = ssub.s32 %s21, %s33
    %s39 = ssub.s32 %s35, %s37
    %s40 = sor.u32 %s38, %s39
    %p41 = scmp.eq.s32.totalorder %s40, 0
    %s43 = sadd.s32 %s42, 1
    %s44 = scalar_select %p41, %s42, %s43
    %p47 = pneg %p41
    %p48 = scmp.eq.s32.totalorder %s14, 17
    %p49 = por %p47, %p48
    %p50 = scmp.ne.s32.totalorder %s42, %s45
    %p51 = scmp.eq.s32.totalorder %s14, 0
    %p52 = por %p50, %p51
    %p53 = scmp.ne.s32.totalorder %s42, %s45
    %p54 = scmp.eq.s32.totalorder %s19, 17
    %p55 = por %p53, %p54
    %p56 = scmp.ne.s32.totalorder %s45, %s46
    %p57 = scmp.eq.s32.totalorder %s19, 0
    %p58 = por %p56, %p57
    %p59 = scmp.ne.s32.totalorder %s45, %s46
    %p60 = scmp.eq.s32.totalorder %s20, 17
    %p61 = por %p59, %p60
    %p63 = scmp.ne.s32.totalorder %s46, %s62
    %p64 = scmp.eq.s32.totalorder %s20, 0
    %p65 = por %p63, %p64
    %s67 = sadd.s32 %s66, 1
    %p70 = scmp.eq.s32.totalorder %s14, 17
    %p71 = scmp.ne.s32.totalorder %s66, %s68
    %p72 = scmp.eq.s32.totalorder %s14, 0
    %p73 = por %p71, %p72
    %p74 = scmp.ne.s32.totalorder %s66, %s68
    %p75 = scmp.eq.s32.totalorder %s19, 17
    %p76 = por %p74, %p75
    %p77 = scmp.ne.s32.totalorder %s68, %s69
    %p78 = scmp.eq.s32.totalorder %s19, 0
    %p79 = por %p77, %p78
    %p80 = scmp.ne.s32.totalorder %s68, %s69
    %p81 = scmp.eq.s32.totalorder %s20, 17
    %p82 = por %p80, %p81
    %p84 = scmp.ne.s32.totalorder %s69, %s83
    %p85 = scmp.eq.s32.totalorder %s20, 0
    %p86 = por %p84, %p85
    %s88 = sadd.s32 %s87, 1
    %p91 = scmp.eq.s32.totalorder %s14, 17
    %p92 = scmp.ne.s32.totalorder %s87, %s89
    %p93 = scmp.eq.s32.totalorder %s14, 0
    %p94 = por %p92, %p93
    %p95 = scmp.ne.s32.totalorder %s87, %s89
    %p96 = scmp.eq.s32.totalorder %s19, 17
    %p97 = por %p95, %p96
    %p98 = scmp.ne.s32.totalorder %s89, %s90
    %p99 = scmp.eq.s32.totalorder %s19, 0
    %p100 = por %p98, %p99
    %p101 = scmp.ne.s32.totalorder %s89, %s90
    %p102 = scmp.eq.s32.totalorder %s20, 17
    %p103 = por %p101, %p102
    %p105 = scmp.ne.s32.totalorder %s90, %s104
    %p106 = scmp.eq.s32.totalorder %s20, 0
    %p107 = por %p105, %p106
    %s109 = sadd.s32 %s108, 1
    %p112 = scmp.eq.s32.totalorder %s14, 17
    %p113 = scmp.ne.s32.totalorder %s108, %s110
    %p114 = scmp.eq.s32.totalorder %s14, 0
    %p115 = por %p113, %p114
    %p116 = scmp.ne.s32.totalorder %s108, %s110
    %p117 = scmp.eq.s32.totalorder %s19, 17
    %p118 = por %p116, %p117
    %p119 = scmp.ne.s32.totalorder %s110, %s111
    %p120 = scmp.eq.s32.totalorder %s19, 0
    %p121 = por %p119, %p120
    %p122 = scmp.ne.s32.totalorder %s110, %s111
    %p123 = scmp.eq.s32.totalorder %s20, 17
    %p124 = por %p122, %p123
    %p126 = scmp.ne.s32.totalorder %s111, %s125
    %p127 = scmp.eq.s32.totalorder %s20, 0
    %p128 = por %p126, %p127
    %s130 = sadd.s32 %s129, 1
    %p133 = scmp.eq.s32.totalorder %s14, 17
    %p134 = scmp.ne.s32.totalorder %s129, %s131
    %p135 = scmp.eq.s32.totalorder %s14, 0
    %p136 = por %p134, %p135
    %p137 = scmp.ne.s32.totalorder %s129, %s131
    %p138 = scmp.eq.s32.totalorder %s19, 17
    %p139 = por %p137, %p138
    %p140 = scmp.ne.s32.totalorder %s131, %s132
    %p141 = scmp.eq.s32.totalorder %s19, 0
    %p142 = por %p140, %p141
    %p143 = scmp.ne.s32.totalorder %s131, %s132
    %p144 = scmp.eq.s32.totalorder %s20, 17
    %p145 = por %p143, %p144
    %p147 = scmp.ne.s32.totalorder %s132, %s146
    %p148 = scmp.eq.s32.totalorder %s20, 0
    %p149 = por %p147, %p148
    %s150 = ssub.s32 %s22, 1
    %p151 = scmp.gt.s32.totalorder %s150, 0
    %s152 = scalar_select %p151, %s150, 0
    %s153 = ssub.s32 %s29, 1
    %p154 = scmp.gt.s32.totalorder %s153, 0
    %s155 = scalar_select %p154, %s153, 0
    %s156 = ssub.s32 %s21, %s33
    %s157 = ssub.s32 %s152, %s155
    %s158 = sor.u32 %s156, %s157
    %p159 = scmp.eq.s32.totalorder %s158, 0
    %s161 = sadd.s32 %s160, 1
    %s162 = scalar_select %p159, %s160, %s161
    %p165 = pneg %p159
    %p166 = scmp.eq.s32.totalorder %s14, 17
    %p167 = por %p165, %p166
    %p168 = scmp.ne.s32.totalorder %s160, %s163
    %p169 = scmp.eq.s32.totalorder %s14, 0
    %p170 = por %p168, %p169
    %p171 = scmp.ne.s32.totalorder %s160, %s163
    %p172 = scmp.eq.s32.totalorder %s19, 17
    %p173 = por %p171, %p172
    %p174 = scmp.ne.s32.totalorder %s163, %s164
    %p175 = scmp.eq.s32.totalorder %s19, 0
    %p176 = por %p174, %p175
    %p177 = scmp.ne.s32.totalorder %s163, %s164
    %p178 = scmp.eq.s32.totalorder %s20, 17
    %p179 = por %p177, %p178
    %p181 = scmp.ne.s32.totalorder %s164, %s180
    %p182 = scmp.eq.s32.totalorder %s20, 0
    %p183 = por %p181, %p182
    %s184 = ssub.s32 %s21, %s33
    %p185 = scmp.eq.s32.totalorder %s184, 0
    %s187 = sadd.s32 %s186, 1
    %s188 = scalar_select %p185, %s186, %s187
    %p191 = pneg %p185
    %p192 = scmp.eq.s32.totalorder %s14, 17
    %p193 = por %p191, %p192
    %p194 = scmp.ne.s32.totalorder %s186, %s189
    %p195 = scmp.eq.s32.totalorder %s14, 0
    %p196 = por %p194, %p195
    %p197 = scmp.ne.s32.totalorder %s186, %s189
    %p198 = scmp.eq.s32.totalorder %s19, 17
    %p199 = por %p197, %p198
    %p200 = scmp.ne.s32.totalorder %s189, %s190
    %p201 = scmp.eq.s32.totalorder %s19, 0
    %p202 = por %p200, %p201
    %p203 = scmp.ne.s32.totalorder %s189, %s190
    %p204 = scmp.eq.s32.totalorder %s20, 17
    %p205 = por %p203, %p204
    %p207 = scmp.ne.s32.totalorder %s190, %s206
    %p208 = scmp.eq.s32.totalorder %s20, 0
    %p209 = por %p207, %p208
    %s210 = ssub.s32 %s21, %s33
    %p211 = scmp.eq.s32.totalorder %s210, 0
    %s213 = sadd.s32 %s212, 1
    %s214 = scalar_select %p211, %s212, %s213
    %p217 = pneg %p211
    %p218 = scmp.eq.s32.totalorder %s14, 17
    %p219 = por %p217, %p218
    %p220 = scmp.ne.s32.totalorder %s212, %s215
    %p221 = scmp.eq.s32.totalorder %s14, 0
    %p222 = por %p220, %p221
    %p223 = scmp.ne.s32.totalorder %s212, %s215
    %p224 = scmp.eq.s32.totalorder %s19, 17
    %p225 = por %p223, %p224
    %p226 = scmp.ne.s32.totalorder %s215, %s216
    %p227 = scmp.eq.s32.totalorder %s19, 0
    %p228 = por %p226, %p227
    %p229 = scmp.ne.s32.totalorder %s215, %s216
    %p230 = scmp.eq.s32.totalorder %s20, 17
    %p231 = por %p229, %p230
    %p233 = scmp.ne.s32.totalorder %s216, %s232
    %p234 = scmp.eq.s32.totalorder %s20, 0
    %p235 = por %p233, %p234
    %p236 = scmp.le.s32.totalorder 1, %s14
    %p237 = scmp.lt.s32.totalorder %s14, 19
    %p238 = pnand %p236, %p237
    %p239 = pneg %p238
    // Predicated region
    $region9: #{residual_block3.4} parent=5 // pred_check
      _
    $region10: #{residual_block3.4} parent=5 // pred_check_branch
      %241 = sbr.rel (%p238) target = $region12
    $region11: #{residual_block3.4} parent=5 // pred_region
      %s242 = ssub.s32 %s14, 1
      // Predicated region
      $region13: #{residual_block3.4} parent=11 // pred_check
        %p243 = pneg %p79
      $region14: #{residual_block3.4} parent=11 // pred_check_branch
        %245 = sbr.rel (%p243) target = $region16
      $region15: #{residual_block3.4} parent=11 // pred_region
        _
      $region16: #{residual_block3.4} parent=11 // pred_fallthru
        _
      // Predicated region
      $region17: #{residual_block3.4} parent=11 // pred_check
        %p246 = pneg %p100
      $region18: #{residual_block3.4} parent=11 // pred_check_branch
        %248 = sbr.rel (%p246) target = $region20
      $region19: #{residual_block3.4} parent=11 // pred_region
        _
      $region20: #{residual_block3.4} parent=11 // pred_fallthru
        _
      // Predicated region
      $region21: #{residual_block3.4} parent=11 // pred_check
        %p249 = pneg %p121
      $region22: #{residual_block3.4} parent=11 // pred_check_branch
        %251 = sbr.rel (%p249) target = $region24
      $region23: #{residual_block3.4} parent=11 // pred_region
        _
      $region24: #{residual_block3.4} parent=11 // pred_fallthru
        _
      // Predicated region
      $region25: #{residual_block3.4} parent=11 // pred_check
        %p252 = pneg %p142
      $region26: #{residual_block3.4} parent=11 // pred_check_branch
        %254 = sbr.rel (%p252) target = $region28
      $region27: #{residual_block3.4} parent=11 // pred_region
        _
      $region28: #{residual_block3.4} parent=11 // pred_fallthru
        _
    $region12: #{residual_block3.4} parent=5 // pred_fallthru
      _
    %p255 = scmp.lt.s32.totalorder %s14, 18
    // Predicated region
    $region29: #{residual_block3.4} parent=5 // pred_check
      %p256 = pneg %p255
    $region30: #{residual_block3.4} parent=5 // pred_check_branch
      %258 = sbr.rel (%p256) target = $region32
    $region31: #{residual_block3.4} parent=5 // pred_region
      // Predicated region
      $region33: #{residual_block3.4} parent=31 // pred_check
        %p259 = pneg %p52
      $region34: #{residual_block3.4} parent=31 // pred_check_branch
        %261 = sbr.rel (%p259) target = $region36
      $region35: #{residual_block3.4} parent=31 // pred_region
        %p262 = scmp.lt.s32.totalorder %s22, 7
        %s263 = scalar_select %p262, %s22, 7
        %p264 = scmp.lt.s32.totalorder %s21, 1
        %s265 = scalar_select %p264, %s21, 1
        %p266 = scmp.lt.s32.totalorder %s263, 7
        %s267 = scalar_select %p266, %s263, 7
        %s268 = smul.addr %s265, 8
        %s269 = sadd.s32 %s267, %s268
        %s270 = smul.addr %s269, 8
        %s271 = scalar_lea.vmem %s0, %s270
        %p272 = scmp.lt.s32.totalorder %s22, 7
        %s273 = scalar_select %p272, %s22, 7
      $region36: #{residual_block3.4} parent=31 // pred_fallthru
        _
    $region32: #{residual_block3.4} parent=5 // pred_fallthru
      _
    %p274 = scmp.le.s32.totalorder 1, %s14
    %p275 = scmp.lt.s32.totalorder %s14, 19
    %p276 = pnand %p274, %p275
    %p277 = pneg %p276
    // Predicated region
    $region37: #{residual_block3.4} parent=5 // pred_check
      _
    $region38: #{residual_block3.4} parent=5 // pred_check_branch
      %279 = sbr.rel (%p276) target = $region40
    $region39: #{residual_block3.4} parent=5 // pred_region
      %s280 = ssub.s32 %s14, 1
      %p281 = scmp.lt.s32.totalorder %s24, 7
      %s282 = scalar_select %p281, %s24, 7
      %p283 = scmp.lt.s32.totalorder %s23, 1
      %s284 = scalar_select %p283, %s23, 1
      %p285 = scmp.lt.s32.totalorder %s282, 7
      %s286 = scalar_select %p285, %s282, 7
      %s287 = smul.addr %s284, 8
      %s288 = sadd.s32 %s286, %s287
      %s289 = smul.addr %s288, 8
      %s290 = scalar_lea.vmem %s0, %s289
      %p291 = pneg %p58
      %p292 = pneg %p55
      %p293 = pneg %p79
      %p294 = pneg %p76
      %p295 = pneg %p100
      %p296 = pneg %p97
      %p297 = pneg %p121
      %p298 = pneg %p118
      %p299 = pneg %p142
      %p300 = pneg %p139
      %p301 = pneg %p176
      %p302 = pneg %p173
      %s303 = ssub.s32 %s24, 1
      %p304 = scmp.gt.s32.totalorder %s303, 0
      %s305 = scalar_select %p304, %s303, 0
      %p306 = scmp.lt.s32.totalorder %s23, 1
      %s307 = scalar_select %p306, %s23, 1
      %p308 = scmp.lt.s32.totalorder %s305, 7
      %s309 = scalar_select %p308, %s305, 7
      %s310 = smul.addr %s307, 8
      %s311 = sadd.s32 %s309, %s310
      %s312 = smul.addr %s311, 8
      %s313 = scalar_lea.vmem %s5, %s312
      %p314 = pneg %p202
      %p315 = pneg %p199
      %p316 = scmp.lt.s32.totalorder %s23, 1
      %s317 = scalar_select %p316, %s23, 1
      %s318 = smul.addr %s317, 8
      %s319 = scalar_lea.vmem %s6, %s318
      %p320 = pneg %p228
      %p321 = pneg %p225
      %p322 = scmp.lt.s32.totalorder %s23, 1
      %s323 = scalar_select %p322, %s23, 1
      %s324 = smul.addr %s323, 8
      %s325 = scalar_lea.vmem %s7, %s324
      %p326 = scmp.lt.s32.totalorder %s24, 7
      %s327 = scalar_select %p326, %s24, 7
      %p328 = scmp.lt.s32.totalorder %s23, 1
      %s329 = scalar_select %p328, %s23, 1
      %p330 = scmp.lt.s32.totalorder %s327, 7
      %s331 = scalar_select %p330, %s327, 7
      %s332 = smul.addr %s329, 8
      %s333 = sadd.s32 %s331, %s332
      %s334 = smul.addr %s333, 8
      %s335 = scalar_lea.vmem %s0, %s334
      %p336 = scmp.lt.s32.totalorder %s24, 7
      %s337 = scalar_select %p336, %s24, 7
      %s338 = ssub.s32 %s24, 1
      %p339 = scmp.gt.s32.totalorder %s338, 0
      %s340 = scalar_select %p339, %s338, 0
      %p341 = scmp.lt.s32.totalorder %s23, 1
      %s342 = scalar_select %p341, %s23, 1
      %p343 = scmp.lt.s32.totalorder %s340, 7
      %s344 = scalar_select %p343, %s340, 7
      %s345 = smul.addr %s342, 8
      %s346 = sadd.s32 %s344, %s345
      %s347 = smul.addr %s346, 8
      %s348 = scalar_lea.vmem %s5, %s347
      %s349 = ssub.s32 %s24, 1
      %p350 = scmp.gt.s32.totalorder %s349, 0
      %s351 = scalar_select %p350, %s349, 0
      %p352 = scmp.lt.s32.totalorder %s23, 1
      %s353 = scalar_select %p352, %s23, 1
      %s354 = smul.addr %s353, 8
      %s355 = scalar_lea.vmem %s6, %s354
      %p356 = scmp.lt.s32.totalorder %s23, 1
      %s357 = scalar_select %p356, %s23, 1
      %s358 = smul.addr %s357, 8
      %s359 = scalar_lea.vmem %s7, %s358
      %p360 = scmp.eq.s32.totalorder %s24, 0
      // Predicated region
      $region41: #{residual_block3.4} parent=39 // pred_check
        %p361 = pneg %p360
      $region42: #{residual_block3.4} parent=39 // pred_check_branch
        %363 = sbr.rel (%p361) target = $region44
      $region43: #{residual_block3.4} parent=39 // pred_region
        %364 = vst [vmem:[#allocation2] sm:$0xff] 0.0
        %365 = vst [vmem:[#allocation2 + $0x8] sm:$0xff] 0.0
        %366 = vst [vmem:[#allocation2 + $0x10] sm:$0xff] 0.0
        %367 = vst [vmem:[#allocation2 + $0x18] sm:$0xff] 0.0
        %368 = vst [vmem:[#allocation2 + $0x20] sm:$0xff] 0.0
        %369 = vst [vmem:[#allocation2 + $0x28] sm:$0xff] 0.0
        %370 = vst [vmem:[#allocation2 + $0x30] sm:$0xff] 0.0
        %371 = vst [vmem:[#allocation2 + $0x38] sm:$0xff] 0.0
        %372 = vst [vmem:[#allocation2 + $0x40] sm:$0xff] 0.0
        %373 = vst [vmem:[#allocation2 + $0x48] sm:$0xff] 0.0
        %374 = vst [vmem:[#allocation2 + $0x50] sm:$0xff] 0.0
        %375 = vst [vmem:[#allocation2 + $0x58] sm:$0xff] 0.0
        %376 = vst [vmem:[#allocation2 + $0x60] sm:$0xff] 0.0
        %377 = vst [vmem:[#allocation2 + $0x68] sm:$0xff] 0.0
        %378 = vst [vmem:[#allocation2 + $0x70] sm:$0xff] 0.0
        %379 = vst [vmem:[#allocation2 + $0x78] sm:$0xff] 0.0
        %380 = vst [vmem:[#allocation2 + $0x80] sm:$0xff] 0.0
        %381 = vst [vmem:[#allocation2 + $0x88] sm:$0xff] 0.0
        %382 = vst [vmem:[#allocation2 + $0x90] sm:$0xff] 0.0
        %383 = vst [vmem:[#allocation2 + $0x98] sm:$0xff] 0.0
        %384 = vst [vmem:[#allocation2 + $0xa0] sm:$0xff] 0.0
        %385 = vst [vmem:[#allocation2 + $0xa8] sm:$0xff] 0.0
        %386 = vst [vmem:[#allocation2 + $0xb0] sm:$0xff] 0.0
        %387 = vst [vmem:[#allocation2 + $0xb8] sm:$0xff] 0.0
        %388 = vst [vmem:[#allocation2 + $0xc0] sm:$0xff] 0.0
        %389 = vst [vmem:[#allocation2 + $0xc8] sm:$0xff] 0.0
        %390 = vst [vmem:[#allocation2 + $0xd0] sm:$0xff] 0.0
        %391 = vst [vmem:[#allocation3] sm:$0xff] 0.0
        %392 = vst [vmem:[#allocation3 + $0x8] sm:$0xff] 0.0
        %vm393 = vcmask 7168
        %394 = vst.msk [vmem:[%s355] sm:$0xff] %vm393, 0.0
        %395 = vst.msk [vmem:[%s359] sm:$0xff] %vm393, 0.0
      $region44: #{residual_block3.4} parent=39 // pred_fallthru
        _
      %p396 = scmp.gt.s32.totalorder %s24, 0
      // Predicated region
      $region45: #{residual_block3.4} parent=39 // pred_check
        %p397 = pneg %p396
      $region46: #{residual_block3.4} parent=39 // pred_check_branch
        %399 = sbr.rel (%p397) target = $region48
      $region47: #{residual_block3.4} parent=39 // pred_region
        %v400 = vld [vmem:[#allocation2 + $0x48] sm:$0xff]
        %v401 = vld [vmem:[#allocation2 + $0x50] sm:$0xff]
        %v402 = vld [vmem:[#allocation2 + $0x58] sm:$0xff]
        %v403 = vld [vmem:[#allocation2 + $0x60] sm:$0xff]
        %v404 = vld [vmem:[#allocation2 + $0x68] sm:$0xff]
        %v405 = vld [vmem:[#allocation2 + $0x70] sm:$0xff]
        %v406 = vld [vmem:[#allocation2 + $0x78] sm:$0xff]
        %v407 = vld [vmem:[#allocation2 + $0x80] sm:$0xff]
        %v408 = vld [vmem:[#allocation2 + $0x88] sm:$0xff]
        %409 = vst [vmem:[#allocation2] sm:$0xff] %v400
        %410 = vst [vmem:[#allocation2 + $0x8] sm:$0xff] %v401
        %411 = vst [vmem:[#allocation2 + $0x10] sm:$0xff] %v402
        %412 = vst [vmem:[#allocation2 + $0x18] sm:$0xff] %v403
        %413 = vst [vmem:[#allocation2 + $0x20] sm:$0xff] %v404
        %414 = vst [vmem:[#allocation2 + $0x28] sm:$0xff] %v405
        %415 = vst [vmem:[#allocation2 + $0x30] sm:$0xff] %v406
        %416 = vst [vmem:[#allocation2 + $0x38] sm:$0xff] %v407
        %417 = vst [vmem:[#allocation2 + $0x40] sm:$0xff] %v408
        %v418 = vld [vmem:[#allocation2 + $0x90] sm:$0xff]
        %v419 = vld [vmem:[#allocation2 + $0x98] sm:$0xff]
        %v420 = vld [vmem:[#allocation2 + $0xa0] sm:$0xff]
        %v421 = vld [vmem:[#allocation2 + $0xa8] sm:$0xff]
        %v422 = vld [vmem:[#allocation2 + $0xb0] sm:$0xff]
        %v423 = vld [vmem:[#allocation2 + $0xb8] sm:$0xff]
        %v424 = vld [vmem:[#allocation2 + $0xc0] sm:$0xff]
        %v425 = vld [vmem:[#allocation2 + $0xc8] sm:$0xff]
        %v426 = vld [vmem:[#allocation2 + $0xd0] sm:$0xff]
        %427 = vst [vmem:[#allocation2 + $0x48] sm:$0xff] %v418
        %428 = vst [vmem:[#allocation2 + $0x50] sm:$0xff] %v419
        %429 = vst [vmem:[#allocation2 + $0x58] sm:$0xff] %v420
        %430 = vst [vmem:[#allocation2 + $0x60] sm:$0xff] %v421
        %431 = vst [vmem:[#allocation2 + $0x68] sm:$0xff] %v422
        %432 = vst [vmem:[#allocation2 + $0x70] sm:$0xff] %v423
        %433 = vst [vmem:[#allocation2 + $0x78] sm:$0xff] %v424
        %434 = vst [vmem:[#allocation2 + $0x80] sm:$0xff] %v425
        %435 = vst [vmem:[#allocation2 + $0x88] sm:$0xff] %v426
      $region48: #{residual_block3.4} parent=39 // pred_fallthru
        _
      %v436 = vld [vmem:[%s335] sm:$0xff]
      %v437 = vld [vmem:[%s1] sm:$0xff]
      %439 = vset.pattern.permute.xlu0 0
      %440 = vperm.xlu0 %439, %v437
      %v441 = vpop.permute.xlu0 %440
      %v443 = vmul.f32 %v436, %v441
      %v444 = vld [vmem:[%s2] sm:$0xff]
      %446 = vset.pattern.permute.xlu0 0
      %447 = vperm.xlu0 %446, %v444
      %v448 = vpop.permute.xlu0 %447
      %v450 = vadd.f32 %v443, %v448
      %v451 = vmax.f32 %v450, 0.0
      %p452 = scmp.lt.s32.totalorder %s24, 8
      %s453 = scalar_select %p452, 1, 0
      %s454 = scvt.s32.f32 %s453
      %v455 = vld [vmem:[%s3] sm:$0x1]
      %v456 = vstv %s454
      %v457 = vmul.f32 %v455, %v456
      %v459 = vlaneseq
      %v460 = vshrl.u32 %v459, 7
      %v461 = vsub.s32 0, %v460
      %v462 = vrot.slane %v457, %v461
      %v464 = vmul.f32 %v451, %v462
      %466 = vrot.lane.b32.xlu0 %v464, 11
      %v467 = vpop.permute.xlu0 %466
      %vm469 = vcmask 1047640
      %470 = vst.msk [vmem:[#allocation3] sm:$0xff] %vm469, %v467
      %vm471 = vcmask 89088
      %472 = vst.msk [vmem:[#allocation3 + $0x8] sm:$0xff] %vm471, %v467
      %v473 = vld [vmem:[#allocation3] sm:$0xff]
      %474 = vst [vmem:[#allocation2 + $0x90] sm:$0xff] %v473
      %v475 = vld [vmem:[#allocation3] sm:$0xff]
      %v476 = vld [vmem:[#allocation3 + $0x8] sm:$0xff]
      %479 = vrot.lane.b32.xlu0 %v475, 127
      %v480 = vpop.permute.xlu0 %479
      %481 = vrot.lane.b32.xlu0 %v476, 127
      %v482 = vpop.permute.xlu0 %481
      %vm483 = vcmask 1039360
      %v484 = vsel %vm483, %v480, %v482
      %486 = vst [vmem:[#allocation2 + $0x98] sm:$0xff] %v484
      %v487 = vld [vmem:[#allocation3] sm:$0xff]
      %v488 = vld [vmem:[#allocation3 + $0x8] sm:$0xff]
      %491 = vrot.lane.b32.xlu0 %v487, 126
      %v492 = vpop.permute.xlu0 %491
      %493 = vrot.lane.b32.xlu0 %v488, 126
      %v494 = vpop.permute.xlu0 %493
      %vm495 = vcmask 1031168
      %v496 = vsel %vm495, %v492, %v494
      %498 = vst [vmem:[#allocation2 + $0xa0] sm:$0xff] %v496
      %v499 = vld [vmem:[#allocation3] sm:$0xff]
      %v500 = vld [vmem:[#allocation3 + $0x8] sm:$0xff]
      %503 = vrot.lane.b32.xlu0 %v499, 118
      %v504 = vpop.permute.xlu0 %503
      %505 = vrot.lane.b32.xlu0 %v500, 118
      %v506 = vpop.permute.xlu0 %505
      %vm507 = vcmask 965632
      %v508 = vsel %vm507, %v504, %v506
      %510 = vst [vmem:[#allocation2 + $0xa8] sm:$0xff] %v508
      %v511 = vld [vmem:[#allocation3] sm:$0xff]
      %v512 = vld [vmem:[#allocation3 + $0x8] sm:$0xff]
      %515 = vrot.lane.b32.xlu0 %v511, 117
      %v516 = vpop.permute.xlu0 %515
      %517 = vrot.lane.b32.xlu0 %v512, 117
      %v518 = vpop.permute.xlu0 %517
      %vm519 = vcmask 957440
      %v520 = vsel %vm519, %v516, %v518
      %522 = vst [vmem:[#allocation2 + $0xb0] sm:$0xff] %v520
      %v523 = vld [vmem:[#allocation3] sm:$0xff]
      %v524 = vld [vmem:[#allocation3 + $0x8] sm:$0xff]
      %527 = vrot.lane.b32.xlu0 %v523, 116
      %v528 = vpop.permute.xlu0 %527
      %529 = vrot.lane.b32.xlu0 %v524, 116
      %v530 = vpop.permute.xlu0 %529
      %vm531 = vcmask 949248
      %v532 = vsel %vm531, %v528, %v530
      %534 = vst [vmem:[#allocation2 + $0xb8] sm:$0xff] %v532
      %v535 = vld [vmem:[#allocation3] sm:$0xff]
      %v536 = vld [vmem:[#allocation3 + $0x8] sm:$0xff]
      %539 = vrot.lane.b32.xlu0 %v535, 108
      %v540 = vpop.permute.xlu0 %539
      %541 = vrot.lane.b32.xlu0 %v536, 108
      %v542 = vpop.permute.xlu0 %541
      %vm543 = vcmask 883712
      %v544 = vsel %vm543, %v540, %v542
      %546 = vst [vmem:[#allocation2 + $0xc0] sm:$0xff] %v544
      %v547 = vld [vmem:[#allocation3] sm:$0xff]
      %v548 = vld [vmem:[#allocation3 + $0x8] sm:$0xff]
      %551 = vrot.lane.b32.xlu0 %v547, 107
      %v552 = vpop.permute.xlu0 %551
      %553 = vrot.lane.b32.xlu0 %v548, 107
      %v554 = vpop.permute.xlu0 %553
      %vm555 = vcmask 875520
      %v556 = vsel %vm555, %v552, %v554
      %558 = vst [vmem:[#allocation2 + $0xc8] sm:$0xff] %v556
      %v559 = vld [vmem:[#allocation3] sm:$0xff]
      %v560 = vld [vmem:[#allocation3 + $0x8] sm:$0xff]
      %563 = vrot.lane.b32.xlu0 %v559, 106
      %v564 = vpop.permute.xlu0 %563
      %565 = vrot.lane.b32.xlu0 %v560, 106
      %v566 = vpop.permute.xlu0 %565
      %vm567 = vcmask 867328
      %v568 = vsel %vm567, %v564, %v566
      %570 = vst [vmem:[#allocation2 + $0xd0] sm:$0xff] %v568
      %p571 = scmp.ge.s32.totalorder %s24, 1
      // Predicated region
      $region49: #{residual_block3.4} parent=39 // pred_check
        %p572 = pneg %p571
      $region50: #{residual_block3.4} parent=39 // pred_check_branch
        %574 = sbr.rel (%p572) target = $region52
      $region51: #{residual_block3.4} parent=39 // pred_region
        %v575 = vld [vmem:[%s4] sm:$0xff]
        %v576 = vld [vmem:[%s4 + $0x8] sm:$0xff]
        %v577 = vld [vmem:[#allocation2] sm:$0xff]
        %v578 = vld [vmem:[#allocation2 + $0x8] sm:$0xff]
        %v579 = vld [vmem:[#allocation2 + $0x10] sm:$0xff]
        %v580 = vld [vmem:[#allocation2 + $0x18] sm:$0xff]
        %v581 = vld [vmem:[#allocation2 + $0x20] sm:$0xff]
        %v582 = vld [vmem:[#allocation2 + $0x28] sm:$0xff]
        %v583 = vld [vmem:[#allocation2 + $0x30] sm:$0xff]
        %v584 = vld [vmem:[#allocation2 + $0x38] sm:$0xff]
        %v585 = vld [vmem:[#allocation2 + $0x40] sm:$0xff]
        %v586 = vld [vmem:[#allocation2 + $0x48] sm:$0xff]
        %v587 = vld [vmem:[#allocation2 + $0x50] sm:$0xff]
        %v588 = vld [vmem:[#allocation2 + $0x58] sm:$0xff]
        %v589 = vld [vmem:[#allocation2 + $0x60] sm:$0xff]
        %v590 = vld [vmem:[#allocation2 + $0x68] sm:$0xff]
        %v591 = vld [vmem:[#allocation2 + $0x70] sm:$0xff]
        %v592 = vld [vmem:[#allocation2 + $0x78] sm:$0xff]
        %v593 = vld [vmem:[#allocation2 + $0x80] sm:$0xff]
        %v594 = vld [vmem:[#allocation2 + $0x88] sm:$0xff]
        %v595 = vld [vmem:[#allocation2 + $0x90] sm:$0xff]
        %v596 = vld [vmem:[#allocation2 + $0x98] sm:$0xff]
        %v597 = vld [vmem:[#allocation2 + $0xa0] sm:$0xff]
        %v598 = vld [vmem:[#allocation2 + $0xa8] sm:$0xff]
        %v599 = vld [vmem:[#allocation2 + $0xb0] sm:$0xff]
        %v600 = vld [vmem:[#allocation2 + $0xb8] sm:$0xff]
        %v601 = vld [vmem:[#allocation2 + $0xc0] sm:$0xff]
        %v602 = vld [vmem:[#allocation2 + $0xc8] sm:$0xff]
        %v603 = vld [vmem:[#allocation2 + $0xd0] sm:$0xff]
        %vm604 = vcmask 719872
        %v606 = vsel %vm604, %v576, 0
        %608 = vmatprep.subr.mxu0 0.0
        %609 = vmatpush1.msra.mxu0 %v592
        %610 = vmatprep.subr.mxu0 0.0
        %611 = vmatpush1.msra.mxu0 %v591
        %612 = vmatprep.subr.mxu0 0.0
        %613 = vmatpush1.msra.mxu0 %v590
        %614 = vmatprep.subr.mxu0 0.0
        %615 = vmatpush1.msra.mxu0 %v589
        %616 = vmatprep.subr.mxu0 0.0
        %617 = vmatpush1.msra.mxu0 %v588
        %618 = vmatprep.subr.mxu0 0.0
        %619 = vmatpush1.msra.mxu0 %v587
        %620 = vmatprep.subr.mxu0 0.0
        %621 = vmatpush1.msra.mxu0 %v586
        %622 = vmatprep.subr.mxu0 0.0
        %623 = vmatpush1.msra.mxu0 %v585
        %624 = vmatprep.subr.mxu0 0.0
        %625 = vmatpush1.msra.mxu0 %v584
        %626 = vmatprep.subr.mxu0 0.0
        %627 = vmatpush1.msra.mxu0 %v583
        %628 = vmatprep.subr.mxu0 0.0
        %629 = vmatpush1.msra.mxu0 %v582
        %630 = vmatprep.subr.mxu0 0.0
        %631 = vmatpush1.msra.mxu0 %v581
        %632 = vmatprep.subr.mxu0 0.0
        %633 = vmatpush1.msra.mxu0 %v580
        %634 = vmatprep.subr.mxu0 0.0
        %635 = vmatpush1.msra.mxu0 %v579
        %636 = vmatprep.subr.mxu0 0.0
        %637 = vmatpush1.msra.mxu0 %v578
        %638 = vmatprep.subr.mxu0 0.0
        %639 = vmatpush1.msra.mxu0 %v577
        %640 = vmatprep.subr.mxu0 0.0
        %641 = vmatpush2.msra.mxu0 0.0
        %642 = vmatprep.subr.mxu0 0.0
        %643 = vmatpush2.msra.mxu0 0.0
        %644 = vmatprep.subr.mxu0 0.0
        %645 = vmatpush2.msra.mxu0 0.0
        %646 = vmatprep.subr.mxu0 0.0
        %647 = vmatpush2.msra.mxu0 0.0
        %648 = vmatprep.subr.mxu0 0.0
        %649 = vmatpush2.msra.mxu0 0.0
        %650 = vmatprep.subr.mxu0 0.0
        %651 = vmatpush2.msra.mxu0 %v603
        %652 = vmatprep.subr.mxu0 0.0
        %653 = vmatpush2.msra.mxu0 %v602
        %654 = vmatprep.subr.mxu0 0.0
        %655 = vmatpush2.msra.mxu0 %v601
        %656 = vmatprep.subr.mxu0 0.0
        %657 = vmatpush2.msra.mxu0 %v600
        %658 = vmatprep.subr.mxu0 0.0
        %659 = vmatpush2.msra.mxu0 %v599
        %660 = vmatprep.subr.mxu0 0.0
        %661 = vmatpush2.msra.mxu0 %v598
        %662 = vmatprep.subr.mxu0 0.0
        %663 = vmatpush2.msra.mxu0 %v597
        %664 = vmatprep.subr.mxu0 0.0
        %665 = vmatpush2.msra.mxu0 %v596
        %666 = vmatprep.subr.mxu0 0.0
        %667 = vmatpush2.msra.mxu0 %v595
        %668 = vmatprep.subr.mxu0 0.0
        %669 = vmatpush2.msra.mxu0 %v594
        %670 = vmatprep.subr.mxu0 0.0
        %671 = vmatpush2.msra.mxu0 %v593
        %672 = vmatprep.mubr.f32.mxu0 %v606
        %673 = vmatmul.mubr.f32.gmra.mxu0 %v575
        %v674 = vpop.f32.mrf.mxu0
        %v675 = vadd.f32 0.0, %v674
        %v676 = vpop.f32.mrf.mxu0
        %677 = vdwg.mxu0
        %678 = vst [vmem:[%s348] sm:$0xff] %v675
        %v679 = vld [vmem:[%s3] sm:$0x1]
        %v681 = vlaneseq
        %v682 = vshrl.u32 %v681, 7
        %v683 = vsub.s32 0, %v682
        %v684 = vrot.slane %v679, %v683
        %v686 = vmul.f32 %v675, %v684
        %v687 = vld [vmem:[%s355] sm:$0xff]
        %688 = vadd.xlane.f32.xlu0 %v686
        %v689 = vpop.xlane.xlu0 %688
        %v690 = vadd.f32 %v687, %v689
        %vm691 = vcmask 7168
        %692 = vst.msk [vmem:[%s355] sm:$0xff] %vm691, %v690
        %v693 = vld [vmem:[%s359] sm:$0xff]
        %v694 = vmul.f32 %v686, %v686
        %695 = vadd.xlane.f32.xlu0 %v694
        %v696 = vpop.xlane.xlu0 %695
        %v697 = vadd.f32 %v693, %v696
        %698 = vst.msk [vmem:[%s359] sm:$0xff] %vm691, %v697
      $region52: #{residual_block3.4} parent=39 // pred_fallthru
        _
      %s699 = ssub.s32 %s24, 1
      %p700 = scmp.gt.s32.totalorder %s699, 0
      %s701 = scalar_select %p700, %s699, 0
      %p702 = scmp.lt.s32.totalorder %s23, 1
      %s703 = scalar_select %p702, %s23, 1
      %p704 = scmp.lt.s32.totalorder %s701, 7
      %s705 = scalar_select %p704, %s701, 7
      %s706 = smul.addr %s703, 8
      %s707 = sadd.s32 %s705, %s706
      %s708 = smul.addr %s707, 8
      %s709 = scalar_lea.vmem %s5, %s708
      %p710 = scmp.lt.s32.totalorder %s23, 1
      %s711 = scalar_select %p710, %s23, 1
      %s712 = smul.addr %s711, 8
      %s713 = scalar_lea.vmem %s6, %s712
      %p714 = scmp.lt.s32.totalorder %s23, 1
      %s715 = scalar_select %p714, %s23, 1
      %s716 = smul.addr %s715, 8
      %s717 = scalar_lea.vmem %s7, %s716
      // Predicated region
      $region53: #{residual_block3.4} parent=39 // pred_check
        %p718 = pneg %p173
      $region54: #{residual_block3.4} parent=39 // pred_check_branch
        %720 = sbr.rel (%p718) target = $region56
      $region55: #{residual_block3.4} parent=39 // pred_region
        %s721 = ssub.s32 %s24, 1
        %p722 = scmp.gt.s32.totalorder %s721, 0
        %s723 = scalar_select %p722, %s721, 0
      $region56: #{residual_block3.4} parent=39 // pred_fallthru
        _
      // Predicated region
      $region57: #{residual_block3.4} parent=39 // pred_check
        %p724 = pneg %p199
      $region58: #{residual_block3.4} parent=39 // pred_check_branch
        %726 = sbr.rel (%p724) target = $region60
      $region59: #{residual_block3.4} parent=39 // pred_region
        _
      $region60: #{residual_block3.4} parent=39 // pred_fallthru
        _
      // Predicated region
      $region61: #{residual_block3.4} parent=39 // pred_check
        %p727 = pneg %p225
      $region62: #{residual_block3.4} parent=39 // pred_check_branch
        %729 = sbr.rel (%p727) target = $region64
      $region63: #{residual_block3.4} parent=39 // pred_region
        _
      $region64: #{residual_block3.4} parent=39 // pred_fallthru
        _
    $region40: #{residual_block3.4} parent=5 // pred_fallthru
      _
    %p730 = scmp.le.s32.totalorder 2, %s14
    // Predicated region
    $region65: #{residual_block3.4} parent=5 // pred_check
      %p731 = pneg %p730
    $region66: #{residual_block3.4} parent=5 // pred_check_branch
      %733 = sbr.rel (%p731) target = $region68
    $region67: #{residual_block3.4} parent=5 // pred_region
      %s734 = ssub.s32 %s14, 2
      // Predicated region
      $region69: #{residual_block3.4} parent=67 // pred_check
        %p735 = pneg %p179
      $region70: #{residual_block3.4} parent=67 // pred_check_branch
        %737 = sbr.rel (%p735) target = $region72
      $region71: #{residual_block3.4} parent=67 // pred_region
        %s738 = ssub.s32 %s26, 1
        %p739 = scmp.gt.s32.totalorder %s738, 0
        %s740 = scalar_select %p739, %s738, 0
        %p741 = scmp.lt.s32.totalorder %s25, 1
        %s742 = scalar_select %p741, %s25, 1
        %p743 = scmp.lt.s32.totalorder %s740, 7
        %s744 = scalar_select %p743, %s740, 7
        %s745 = smul.addr %s742, 8
        %s746 = sadd.s32 %s744, %s745
        %s747 = smul.addr %s746, 8
        %s748 = scalar_lea.vmem %s5, %s747
      $region72: #{residual_block3.4} parent=67 // pred_fallthru
        _
      // Predicated region
      $region73: #{residual_block3.4} parent=67 // pred_check
        %p749 = pneg %p205
      $region74: #{residual_block3.4} parent=67 // pred_check_branch
        %751 = sbr.rel (%p749) target = $region76
      $region75: #{residual_block3.4} parent=67 // pred_region
        %p752 = scmp.lt.s32.totalorder %s25, 1
        %s753 = scalar_select %p752, %s25, 1
        %s754 = smul.addr %s753, 8
        %s755 = scalar_lea.vmem %s6, %s754
      $region76: #{residual_block3.4} parent=67 // pred_fallthru
        _
      // Predicated region
      $region77: #{residual_block3.4} parent=67 // pred_check
        %p756 = pneg %p231
      $region78: #{residual_block3.4} parent=67 // pred_check_branch
        %758 = sbr.rel (%p756) target = $region80
      $region79: #{residual_block3.4} parent=67 // pred_region
        %p759 = scmp.lt.s32.totalorder %s25, 1
        %s760 = scalar_select %p759, %s25, 1
        %s761 = smul.addr %s760, 8
        %s762 = scalar_lea.vmem %s7, %s761
      $region80: #{residual_block3.4} parent=67 // pred_fallthru
        _
    $region68: #{residual_block3.4} parent=5 // pred_fallthru
      _
  $region6: #{residual_block3.4} parent=0 // loop_footer
    %s18 = sadd.s32 1, %s14
  $region7: #{residual_block3.4} parent=0 // loop_footer_branch
    %13 = sbr.rel target = $region3
  $region8: #{residual_block3.4} parent=0 // loop_exit
    _

</llo_original>
